<compile_context>
chip_gen: v6e
topology: v6e:2x2x1
jax: 0.10.0
libtpu: 0.0.40
codegen_flags: <defaults>
</compile_context>

<pallas_src>
import functools
import math

import jax
import jax.numpy as jnp
import numpy as np
from jax.experimental import pallas as pl
from jax.experimental.pallas import tpu as pltpu


def _round_up(a, b):
    return (a + b - 1) // b * b


def _cdiv(a, b):
    return (a + b - 1) // b


def _conv_tbc_kernel(x_ref, halo_ref, w_ref, b_ref, o_ref, acc_ref, win_ref, *,
                     kernel_size, batch):
    """One output-time tile.

    x_ref    : (M, C_in)        rows [i*M, (i+1)*M) of the flattened (T*B, C_in) input
    halo_ref : (Hb, C_in)       first Hb rows of the *next* tile (for taps k >= 1)
    w_ref    : (K, C_in, C_out) full weight, VMEM-resident
    b_ref    : (1, C_out)       bias (f32)
    o_ref    : (M, C_out)       output tile
    acc_ref  : (M, C_out) f32   accumulator scratch
    win_ref  : (M+Hb, C_in)     contiguous input-window scratch
    """
    m = o_ref.shape[0]
    halo = win_ref.shape[0] - m

    # Assemble the contiguous (tile + halo) input window once per tile.
    # Both stores are sublane-aligned (m and halo are multiples of 8).
    win_ref[pl.ds(0, m), :] = x_ref[...]
    win_ref[pl.ds(m, halo), :] = halo_ref[...]

    # Fold the bias into the accumulator init (saves one full-tile VPU add).
    acc_ref[...] = jnp.broadcast_to(b_ref[...].astype(jnp.float32), acc_ref.shape)

    # K is small and static -> unrolled chain of MXU matmuls, each with the
    # full M = tile_rows (time*batch folded) and f32 accumulation.
    for kk in range(kernel_size):
        xk = win_ref[pl.ds(kk * batch, m), :]          # static-offset window slice
        acc_ref[...] += jnp.dot(xk, w_ref[kk], preferred_element_type=jnp.float32)

    o_ref[...] = acc_ref[...].astype(o_ref.dtype)


def conv_tbc(x, weight, bias, padding=0, *, block_rows=1024, compute_dtype=None,
             vmem_limit_bytes=32 * 1024 * 1024, interpret=False):
    """Pallas implementation of torch.conv_tbc.

    x      : (T, B, C_in)
    weight : (K, C_in, C_out)
    bias   : (C_out,)
    """
    t, b, c_in = x.shape
    k, c_in_w, c_out = weight.shape
    assert c_in == c_in_w, "in_channels mismatch"
    t_out = t + 2 * padding - k + 1
    assert t_out > 0, "output length must be positive"

    out_dtype = x.dtype
    cdtype = np.dtype(compute_dtype) if compute_dtype is not None else np.dtype(x.dtype)

    # ---- tiling geometry, in flattened (time*batch) rows -------------------
    halo_rows = max(8, _round_up((k - 1) * b, 8))          # rows of next tile needed
    unit = halo_rows * b // math.gcd(halo_rows, b)          # lcm -> row granularity
    total_rows = _round_up(t_out * b, unit)

    in_b = cdtype.itemsize
    out_b = np.dtype(out_dtype).itemsize

    def _vmem_est(m):
        return (2 * (m + halo_rows) * c_in * in_b           # x tile + halo, double-buffered
                + 2 * m * c_out * out_b                     # output tile, double-buffered
                + m * c_out * 4                             # f32 accumulator scratch
                + (m + halo_rows) * c_in * in_b             # window scratch
                + 2 * k * c_in * c_out * in_b               # weights (resident)
                + 2 * c_out * 4)                            # bias

    budget = 16 * 1024 * 1024                               # well under scoped VMEM on v5e/v6e/v7x
    tile_rows = min(_round_up(block_rows, unit), total_rows)
    while tile_rows > unit and _vmem_est(tile_rows) > budget:
        tile_rows = max(unit, _round_up(tile_rows // 2, unit))

    tile_t = tile_rows // b
    num_tiles = _cdiv(t_out, tile_t)
    padded_rows = num_tiles * tile_rows
    rows_needed = padded_rows + halo_rows
    t_total = _cdiv(rows_needed, b)                         # padded time length

    # ---- glue: pad time, flatten (T, B) -> rows, cast ----------------------
    # TODO(synk): for very large T, fold the zero padding into the kernel with
    # pl.when-masked boundary taps instead of this extra HBM round-trip of x.
    pad_right = t_total - t - padding
    assert pad_right >= 0
    x_padded = jnp.pad(x, ((padding, pad_right), (0, 0), (0, 0)))
    if cdtype != x_padded.dtype:
        x_padded = x_padded.astype(cdtype)
    w_c = weight.astype(cdtype) if cdtype != weight.dtype else weight
    x_flat = x_padded.reshape(t_total * b, c_in)            # contiguous -> free reshape
    bias2 = bias.reshape(1, c_out).astype(jnp.float32)

    halo_stride = tile_rows // halo_rows                    # exact by construction

    kernel = functools.partial(_conv_tbc_kernel, kernel_size=k, batch=b)
    out_flat = pl.pallas_call(
        kernel,
        out_shape=jax.ShapeDtypeStruct((padded_rows, c_out), out_dtype),
        grid_spec=pltpu.PrefetchScalarGridSpec(
            num_scalar_prefetch=0,
            grid=(num_tiles,),
            in_specs=[
                # body: rows [i*tile_rows, (i+1)*tile_rows)
                pl.BlockSpec((tile_rows, c_in), lambda i: (i, 0)),
                # halo: first halo_rows rows of the next tile
                pl.BlockSpec((halo_rows, c_in),
                             lambda i: ((i + 1) * halo_stride, 0)),
                # weight & bias: constant block index -> fetched once, resident
                pl.BlockSpec((k, c_in, c_out), lambda i: (0, 0, 0)),
                pl.BlockSpec((1, c_out), lambda i: (0, 0)),
            ],
            out_specs=pl.BlockSpec((tile_rows, c_out), lambda i: (i, 0)),
            scratch_shapes=[
                pltpu.VMEM((tile_rows, c_out), jnp.float32),
                pltpu.VMEM((tile_rows + halo_rows, c_in), cdtype),
            ],
        ),
        compiler_params=pltpu.CompilerParams(
            dimension_semantics=("parallel",),              # lets v7x use both TCs
            vmem_limit_bytes=int(vmem_limit_bytes),
        ),
        interpret=interpret,
    )(x_flat, x_flat, w_c, bias2)

    out = out_flat.reshape(num_tiles * tile_t, b, c_out)[:t_out]
    return out


def _reference_conv_tbc(x, weight, bias, padding=0):
    # Pure-JAX reference for correctness checking.
    t, b, c_in = x.shape
    k, _, c_out = weight.shape
    t_out = t + 2 * padding - k + 1
    x_pad = jnp.pad(x, ((padding, padding), (0, 0), (0, 0)))
    out = jnp.zeros((t_out, b, c_out), dtype=jnp.float32)
    for kk in range(k):
        out = out + jnp.einsum(
            "tbi,io->tbo",
            x_pad[kk:kk + t_out].astype(jnp.float32),
            weight[kk].astype(jnp.float32),
            precision=jax.lax.Precision.HIGHEST)
    return (out + bias.astype(jnp.float32)).astype(x.dtype)


if __name__ == "__main__":
    # Small but non-trivial shapes: multiple time tiles + a ragged last tile.
    in_channels = 64
    out_channels = 128          # lane-dense output (multiple of 128)
    kernel_size = 3
    padding = 1
    T, B = 300, 2

    key = jax.random.PRNGKey(0)
    kx, kw, kb = jax.random.split(key, 3)

    x = jax.random.normal(kx, (T, B, in_channels), dtype=jnp.float32)
    # Deterministic synthetic params (ConvTBC.__init__ leaves them uninitialized).
    weight = 0.1 * jax.random.normal(
        kw, (kernel_size, in_channels, out_channels), dtype=jnp.float32)
    bias = 0.1 * jax.random.normal(kb, (out_channels,), dtype=jnp.float32)

    # block_rows=256 -> 3 time tiles (128, 128, 44 output steps) to exercise
    # the tiled/halo path even at this small demo size.
    out = conv_tbc(x, weight, bias, padding=padding, block_rows=256)
    out = jax.block_until_ready(out)

    ref = _reference_conv_tbc(x, weight, bias, padding=padding)
    assert out.shape == (T + 2 * padding - kernel_size + 1, B, out_channels), out.shape
    assert jnp.allclose(out, ref, atol=5e-4, rtol=5e-4), "mismatch vs reference"

    print("KERNEL_OK")
</pallas_src>

<mosaic_0001>
module attributes {stable_mosaic.version = 11 : i64} {
  func.func @_conv_tbc_kernel(%arg0: i32, %arg1: memref<256x64xf32, #tpu.memory_space<vmem>>, %arg2: memref<8x64xf32, #tpu.memory_space<vmem>>, %arg3: memref<3x64x128xf32, #tpu.memory_space<vmem>>, %arg4: memref<1x128xf32, #tpu.memory_space<vmem>>, %arg5: memref<256x128xf32, #tpu.memory_space<vmem>>, %arg6: memref<256x128xf32, #tpu.memory_space<vmem>>, %arg7: memref<264x64xf32, #tpu.memory_space<vmem>>) attributes {dimension_semantics = [#tpu.dimension_semantics<parallel>], iteration_bounds = array<i64: 3>, scalar_prefetch = 0 : i64, scratch_operands = 2 : i64, tpu.core_type = #tpu.core_type<tc>, window_params = [{transform_indices = @transform_0, window_bounds = array<i64: 256, 64>}, {transform_indices = @transform_1, window_bounds = array<i64: 8, 64>}, {pipeline_mode = #tpu.pipeline_mode<synchronous>, transform_indices = @transform_2, window_bounds = array<i64: 3, 64, 128>}, {pipeline_mode = #tpu.pipeline_mode<synchronous>, transform_indices = @transform_3, window_bounds = array<i64: 1, 128>}, {transform_indices = @transform_4, window_bounds = array<i64: 256, 128>}]} {
    %c0 = arith.constant 0 : index
    %c0_0 = arith.constant 0 : index
    %0 = vector.load %arg1[%c0, %c0_0] : memref<256x64xf32, #tpu.memory_space<vmem>>, vector<256x64xf32>
    %c0_1 = arith.constant 0 : index
    %c0_2 = arith.constant 0 : index
    %1 = vector.load %arg7[%c0_1, %c0_2] : memref<264x64xf32, #tpu.memory_space<vmem>>, vector<256x64xf32>
    tpu.vector_store %arg7[%c0_1, %c0_2], %0 {strides = array<i32>} : memref<264x64xf32, #tpu.memory_space<vmem>>, vector<256x64xf32>,
    %c0_3 = arith.constant 0 : index
    %c0_4 = arith.constant 0 : index
    %2 = vector.load %arg2[%c0_3, %c0_4] : memref<8x64xf32, #tpu.memory_space<vmem>>, vector<8x64xf32>
    %c256 = arith.constant 256 : index
    %c0_5 = arith.constant 0 : index
    %3 = vector.load %arg7[%c256, %c0_5] : memref<264x64xf32, #tpu.memory_space<vmem>>, vector<8x64xf32>
    tpu.vector_store %arg7[%c256, %c0_5], %2 {strides = array<i32>} : memref<264x64xf32, #tpu.memory_space<vmem>>, vector<8x64xf32>,
    %c0_6 = arith.constant 0 : index
    %c0_7 = arith.constant 0 : index
    %4 = vector.load %arg4[%c0_6, %c0_7] : memref<1x128xf32, #tpu.memory_space<vmem>>, vector<1x128xf32>
    %5 = vector.shape_cast %4 : vector<1x128xf32> to vector<1x128xf32>
    %6 = vector.broadcast %5 : vector<1x128xf32> to vector<256x128xf32>
    %c0_8 = arith.constant 0 : index
    %c0_9 = arith.constant 0 : index
    %7 = vector.load %arg6[%c0_8, %c0_9] : memref<256x128xf32, #tpu.memory_space<vmem>>, vector<256x128xf32>
    tpu.vector_store %arg6[%c0_8, %c0_9], %6 {strides = array<i32>} : memref<256x128xf32, #tpu.memory_space<vmem>>, vector<256x128xf32>,
    %c0_10 = arith.constant 0 : index
    %c0_11 = arith.constant 0 : index
    %8 = vector.load %arg7[%c0_10, %c0_11] : memref<264x64xf32, #tpu.memory_space<vmem>>, vector<256x64xf32>
    %c0_12 = arith.constant 0 : index
    %c0_13 = arith.constant 0 : index
    %9 = vector.load %arg6[%c0_12, %c0_13] : memref<256x128xf32, #tpu.memory_space<vmem>>, vector<256x128xf32>
    %c0_14 = arith.constant 0 : index
    %c0_15 = arith.constant 0 : index
    %c0_16 = arith.constant 0 : index
    %10 = vector.load %arg3[%c0_14, %c0_15, %c0_16] : memref<3x64x128xf32, #tpu.memory_space<vmem>>, vector<1x64x128xf32>
    %11 = vector.shape_cast %10 : vector<1x64x128xf32> to vector<64x128xf32>
    %cst = arith.constant dense<0.000000e+00> : vector<256x128xf32>
    %12 = tpu.matmul %8, %11, %cst {dimension_numbers = #tpu.dot_dimension_numbers<[1], [0], [0], [1], [0, 0, 1, 1], [], []>} : vector<256x64xf32>, vector<64x128xf32>, vector<256x128xf32> -> vector<256x128xf32>
    %13 = arith.addf %9, %12 : vector<256x128xf32>
    %c0_17 = arith.constant 0 : index
    %c0_18 = arith.constant 0 : index
    %14 = vector.load %arg6[%c0_17, %c0_18] : memref<256x128xf32, #tpu.memory_space<vmem>>, vector<256x128xf32>
    tpu.vector_store %arg6[%c0_17, %c0_18], %13 {strides = array<i32>} : memref<256x128xf32, #tpu.memory_space<vmem>>, vector<256x128xf32>,
    %c2 = arith.constant 2 : index
    %c0_19 = arith.constant 0 : index
    %15 = vector.load %arg7[%c2, %c0_19] : memref<264x64xf32, #tpu.memory_space<vmem>>, vector<256x64xf32>
    %c0_20 = arith.constant 0 : index
    %c0_21 = arith.constant 0 : index
    %16 = vector.load %arg6[%c0_20, %c0_21] : memref<256x128xf32, #tpu.memory_space<vmem>>, vector<256x128xf32>
    %c1 = arith.constant 1 : index
    %c0_22 = arith.constant 0 : index
    %c0_23 = arith.constant 0 : index
    %17 = vector.load %arg3[%c1, %c0_22, %c0_23] : memref<3x64x128xf32, #tpu.memory_space<vmem>>, vector<1x64x128xf32>
    %18 = vector.shape_cast %17 : vector<1x64x128xf32> to vector<64x128xf32>
    %cst_24 = arith.constant dense<0.000000e+00> : vector<256x128xf32>
    %19 = tpu.matmul %15, %18, %cst_24 {dimension_numbers = #tpu.dot_dimension_numbers<[1], [0], [0], [1], [0, 0, 1, 1], [], []>} : vector<256x64xf32>, vector<64x128xf32>, vector<256x128xf32> -> vector<256x128xf32>
    %20 = arith.addf %16, %19 : vector<256x128xf32>
    %c0_25 = arith.constant 0 : index
    %c0_26 = arith.constant 0 : index
    %21 = vector.load %arg6[%c0_25, %c0_26] : memref<256x128xf32, #tpu.memory_space<vmem>>, vector<256x128xf32>
    tpu.vector_store %arg6[%c0_25, %c0_26], %20 {strides = array<i32>} : memref<256x128xf32, #tpu.memory_space<vmem>>, vector<256x128xf32>,
    %c4 = arith.constant 4 : index
    %c0_27 = arith.constant 0 : index
    %22 = vector.load %arg7[%c4, %c0_27] : memref<264x64xf32, #tpu.memory_space<vmem>>, vector<256x64xf32>
    %c0_28 = arith.constant 0 : index
    %c0_29 = arith.constant 0 : index
    %23 = vector.load %arg6[%c0_28, %c0_29] : memref<256x128xf32, #tpu.memory_space<vmem>>, vector<256x128xf32>
    %c2_30 = arith.constant 2 : index
    %c0_31 = arith.constant 0 : index
    %c0_32 = arith.constant 0 : index
    %24 = vector.load %arg3[%c2_30, %c0_31, %c0_32] : memref<3x64x128xf32, #tpu.memory_space<vmem>>, vector<1x64x128xf32>
    %25 = vector.shape_cast %24 : vector<1x64x128xf32> to vector<64x128xf32>
    %cst_33 = arith.constant dense<0.000000e+00> : vector<256x128xf32>
    %26 = tpu.matmul %22, %25, %cst_33 {dimension_numbers = #tpu.dot_dimension_numbers<[1], [0], [0], [1], [0, 0, 1, 1], [], []>} : vector<256x64xf32>, vector<64x128xf32>, vector<256x128xf32> -> vector<256x128xf32>
    %27 = arith.addf %23, %26 : vector<256x128xf32>
    %c0_34 = arith.constant 0 : index
    %c0_35 = arith.constant 0 : index
    %28 = vector.load %arg6[%c0_34, %c0_35] : memref<256x128xf32, #tpu.memory_space<vmem>>, vector<256x128xf32>
    tpu.vector_store %arg6[%c0_34, %c0_35], %27 {strides = array<i32>} : memref<256x128xf32, #tpu.memory_space<vmem>>, vector<256x128xf32>,
    %c0_36 = arith.constant 0 : index
    %c0_37 = arith.constant 0 : index
    %29 = vector.load %arg6[%c0_36, %c0_37] : memref<256x128xf32, #tpu.memory_space<vmem>>, vector<256x128xf32>
    %c0_38 = arith.constant 0 : index
    %c0_39 = arith.constant 0 : index
    %30 = vector.load %arg5[%c0_38, %c0_39] : memref<256x128xf32, #tpu.memory_space<vmem>>, vector<256x128xf32>
    tpu.vector_store %arg5[%c0_38, %c0_39], %29 {strides = array<i32>} : memref<256x128xf32, #tpu.memory_space<vmem>>, vector<256x128xf32>,
    return
  }
  func.func @transform_0(%arg0: i32) -> (i32, i32) {
    %c0_i32 = arith.constant 0 : i32
    %c0_i32_0 = arith.constant 0 : i32
    return %arg0, %c0_i32 : i32, i32
  }
  func.func @transform_1(%arg0: i32) -> (i32, i32) {
    %c1_i32 = arith.constant 1 : i32
    %0 = arith.addi %arg0, %c1_i32 : i32
    %c32_i32 = arith.constant 32 : i32
    %1 = arith.muli %0, %c32_i32 : i32
    %c0_i32 = arith.constant 0 : i32
    %c0_i32_0 = arith.constant 0 : i32
    return %1, %c0_i32 : i32, i32
  }
  func.func @transform_2(%arg0: i32) -> (i32, i32, i32) {
    %c0_i32 = arith.constant 0 : i32
    %c0_i32_0 = arith.constant 0 : i32
    %c0_i32_1 = arith.constant 0 : i32
    %c0_i32_2 = arith.constant 0 : i32
    return %c0_i32, %c0_i32_0, %c0_i32_1 : i32, i32, i32
  }
  func.func @transform_3(%arg0: i32) -> (i32, i32) {
    %c0_i32 = arith.constant 0 : i32
    %c0_i32_0 = arith.constant 0 : i32
    %c0_i32_1 = arith.constant 0 : i32
    return %c0_i32, %c0_i32_0 : i32, i32
  }
  func.func @transform_4(%arg0: i32) -> (i32, i32) {
    %c0_i32 = arith.constant 0 : i32
    %c0_i32_0 = arith.constant 0 : i32
    return %arg0, %c0_i32 : i32, i32
  }
}

</mosaic_0001>

<llo_original>
// kernel: tpu_custom_call.1
$region0: #{tpu_custom_call.1}
  #allocation0 [shape = 'u32[]', space=smem, size = 0x4, offset = 0x4, fixed_abs, tag = 'smem constant byte address 0x4 - core index']
  #allocation1 [shape = 'u32[144,128]{1,0:T(1,128)}', space=vmem, size = 0x12000, scoped, tag = 'internal scratch']
  #allocation2 [shape = 'f32[256,128]{1,0:T(8,128)}', space=vmem, size = 0x20000, scoped, tag = 'scratch operand']
  #allocation3 [shape = 'f32[264,64]{1,0:T(8,128)}', space=vmem, size = 0x21000, scoped, tag = 'scratch operand']
  %s0 = inlined_call_operand.vmem [shape: f32[776,64], index: 0, kind: input, shape index: {}]
  %s1 = inlined_call_operand.vmem [shape: f32[776,64], index: 1, kind: input, shape index: {}]
  %s2 = inlined_call_operand.vmem [shape: f32[3,64,128], index: 2, kind: input, shape index: {}]
  %s3 = inlined_call_operand.vmem [shape: f32[1,128], index: 3, kind: input, shape index: {}]
  %s4 = inlined_call_operand.hbm [shape: f32[768,128], index: 4, kind: output, shape index: {}]
  %s5 = sld [smem:[#allocation0]]
  $region49: #{tpu_custom_call.1} parent=0
    _
  %s7 = ssub.s32 1, %s5
  %s8 = scalar_select 0, %s7, %s5
  $region1: #{tpu_custom_call.1} parent=0
    #allocation4 [shape = 'u8[262144]{0}', space=vmem, size = 0x40000, scoped, tag = 'output window, operand 0']
    #allocation5 [shape = 's32[2]{0}', space=sflag, size = 0x8, scoped, tag = 'scoped memory for tpu_custom_call.1']
    %9 = vsyncpa [#allocation5], 0
    %s10 = scalar_lea.sflag [#allocation5], 1
    %11 = vsyncpa %s10, 0
    loop: start=0, step=1, limit=5
    $region2: #{tpu_custom_call.1} parent=1 // loop_pre_header
      _
    $region3: #{tpu_custom_call.1} parent=1 // loop_header
      %s13 = sphi 0, %s17
      %p14 = scmp.ge.s32.totalorder %s13, 5
      %s23 = sphi 0, %s25
      %s26 = sphi 0, %s23
      %s27 = sphi 0, %s26
      %s43 = sphi 0, %s27
      %s53 = sphi 0, %s55
      %s56 = sphi 0, %s53
      %s57 = sphi 0, %s56
      %s73 = sphi 0, %s57
      %s77 = sphi 0, %s77
      %s79 = sphi 0, %s77
      %s80 = sphi 0, %s79
      %s94 = sphi 0, %s80
      %s98 = sphi 0, %s98
      %s100 = sphi 0, %s98
      %s101 = sphi 0, %s100
      %s115 = sphi 0, %s101
      %s121 = sphi 0, %s123
      %s124 = sphi 0, %s121
      %s125 = sphi 0, %s124
      %s141 = sphi 0, %s125
    $region4: #{tpu_custom_call.1} parent=1 // loop_header_branch
      %16 = sbr.rel (%p14) target = $region8
    $region5: #{tpu_custom_call.1} parent=1 // loop_body
      %s18 = ssub.s32 %s13, 1
      %s19 = ssub.s32 %s13, 2
      %s20 = sadd.s32 %s13, 1
      %s21 = ssub.s32 %s13, %s20
      %p22 = scmp.eq.s32.totalorder %s21, 0
      %s24 = sadd.s32 %s23, 1
      %s25 = scalar_select %p22, %s23, %s24
      %p28 = pneg %p22
      %p29 = scmp.eq.s32.totalorder %s13, 2
      %p30 = por %p28, %p29
      %p31 = scmp.ne.s32.totalorder %s23, %s26
      %p32 = scmp.eq.s32.totalorder %s13, 0
      %p33 = por %p31, %p32
      %p34 = scmp.ne.s32.totalorder %s23, %s26
      %p35 = scmp.eq.s32.totalorder %s18, 2
      %p36 = por %p34, %p35
      %p37 = scmp.ne.s32.totalorder %s26, %s27
      %p38 = scmp.eq.s32.totalorder %s18, 0
      %p39 = por %p37, %p38
      %p40 = scmp.ne.s32.totalorder %s26, %s27
      %p41 = scmp.eq.s32.totalorder %s19, 2
      %p42 = por %p40, %p41
      %p44 = scmp.ne.s32.totalorder %s27, %s43
      %p45 = scmp.eq.s32.totalorder %s19, 0
      %p46 = por %p44, %p45
      %s47 = sadd.s32 %s13, 1
      %s48 = smul.u32 %s47, 32
      %s49 = sadd.s32 %s20, 1
      %s50 = smul.u32 %s49, 32
      %s51 = ssub.s32 %s48, %s50
      %p52 = scmp.eq.s32.totalorder %s51, 0
      %s54 = sadd.s32 %s53, 1
      %s55 = scalar_select %p52, %s53, %s54
      %p58 = pneg %p52
      %p59 = scmp.eq.s32.totalorder %s13, 2
      %p60 = por %p58, %p59
      %p61 = scmp.ne.s32.totalorder %s53, %s56
      %p62 = scmp.eq.s32.totalorder %s13, 0
      %p63 = por %p61, %p62
      %p64 = scmp.ne.s32.totalorder %s53, %s56
      %p65 = scmp.eq.s32.totalorder %s18, 2
      %p66 = por %p64, %p65
      %p67 = scmp.ne.s32.totalorder %s56, %s57
      %p68 = scmp.eq.s32.totalorder %s18, 0
      %p69 = por %p67, %p68
      %p70 = scmp.ne.s32.totalorder %s56, %s57
      %p71 = scmp.eq.s32.totalorder %s19, 2
      %p72 = por %p70, %p71
      %p74 = scmp.ne.s32.totalorder %s57, %s73
      %p75 = scmp.eq.s32.totalorder %s19, 0
      %p76 = por %p74, %p75
      %s78 = sadd.s32 %s77, 1
      %p81 = scmp.eq.s32.totalorder %s13, 2
      %p82 = scmp.ne.s32.totalorder %s77, %s79
      %p83 = scmp.eq.s32.totalorder %s13, 0
      %p84 = por %p82, %p83
      %p85 = scmp.ne.s32.totalorder %s77, %s79
      %p86 = scmp.eq.s32.totalorder %s18, 2
      %p87 = por %p85, %p86
      %p88 = scmp.ne.s32.totalorder %s79, %s80
      %p89 = scmp.eq.s32.totalorder %s18, 0
      %p90 = por %p88, %p89
      %p91 = scmp.ne.s32.totalorder %s79, %s80
      %p92 = scmp.eq.s32.totalorder %s19, 2
      %p93 = por %p91, %p92
      %p95 = scmp.ne.s32.totalorder %s80, %s94
      %p96 = scmp.eq.s32.totalorder %s19, 0
      %p97 = por %p95, %p96
      %s99 = sadd.s32 %s98, 1
      %p102 = scmp.eq.s32.totalorder %s13, 2
      %p103 = scmp.ne.s32.totalorder %s98, %s100
      %p104 = scmp.eq.s32.totalorder %s13, 0
      %p105 = por %p103, %p104
      %p106 = scmp.ne.s32.totalorder %s98, %s100
      %p107 = scmp.eq.s32.totalorder %s18, 2
      %p108 = por %p106, %p107
      %p109 = scmp.ne.s32.totalorder %s100, %s101
      %p110 = scmp.eq.s32.totalorder %s18, 0
      %p111 = por %p109, %p110
      %p112 = scmp.ne.s32.totalorder %s100, %s101
      %p113 = scmp.eq.s32.totalorder %s19, 2
      %p114 = por %p112, %p113
      %p116 = scmp.ne.s32.totalorder %s101, %s115
      %p117 = scmp.eq.s32.totalorder %s19, 0
      %p118 = por %p116, %p117
      %s119 = ssub.s32 %s13, %s20
      %p120 = scmp.eq.s32.totalorder %s119, 0
      %s122 = sadd.s32 %s121, 1
      %s123 = scalar_select %p120, %s121, %s122
      %p126 = pneg %p120
      %p127 = scmp.eq.s32.totalorder %s13, 2
      %p128 = por %p126, %p127
      %p129 = scmp.ne.s32.totalorder %s121, %s124
      %p130 = scmp.eq.s32.totalorder %s13, 0
      %p131 = por %p129, %p130
      %p132 = scmp.ne.s32.totalorder %s121, %s124
      %p133 = scmp.eq.s32.totalorder %s18, 2
      %p134 = por %p132, %p133
      %p135 = scmp.ne.s32.totalorder %s124, %s125
      %p136 = scmp.eq.s32.totalorder %s18, 0
      %p137 = por %p135, %p136
      %p138 = scmp.ne.s32.totalorder %s124, %s125
      %p139 = scmp.eq.s32.totalorder %s19, 2
      %p140 = por %p138, %p139
      %p142 = scmp.ne.s32.totalorder %s125, %s141
      %p143 = scmp.eq.s32.totalorder %s19, 0
      %p144 = por %p142, %p143
      %p145 = scmp.le.s32.totalorder 1, %s13
      %p146 = scmp.lt.s32.totalorder %s13, 4
      %p147 = pnand %p145, %p146
      %p148 = pneg %p147
      // Predicated region
      $region9: #{tpu_custom_call.1} parent=5 // pred_check
        _
      $region10: #{tpu_custom_call.1} parent=5 // pred_check_branch
        %150 = sbr.rel (%p147) target = $region12
      $region11: #{tpu_custom_call.1} parent=5 // pred_region
        %s151 = ssub.s32 %s13, 1
        // Predicated region
        $region13: #{tpu_custom_call.1} parent=11 // pred_check
          %p152 = pneg %p90
        $region14: #{tpu_custom_call.1} parent=11 // pred_check_branch
          %154 = sbr.rel (%p152) target = $region16
        $region15: #{tpu_custom_call.1} parent=11 // pred_region
          _
        $region16: #{tpu_custom_call.1} parent=11 // pred_fallthru
          _
        // Predicated region
        $region17: #{tpu_custom_call.1} parent=11 // pred_check
          %p155 = pneg %p111
        $region18: #{tpu_custom_call.1} parent=11 // pred_check_branch
          %157 = sbr.rel (%p155) target = $region20
        $region19: #{tpu_custom_call.1} parent=11 // pred_region
          _
        $region20: #{tpu_custom_call.1} parent=11 // pred_fallthru
          _
      $region12: #{tpu_custom_call.1} parent=5 // pred_fallthru
        _
      %p158 = scmp.lt.s32.totalorder %s13, 3
      // Predicated region
      $region21: #{tpu_custom_call.1} parent=5 // pred_check
        %p159 = pneg %p158
      $region22: #{tpu_custom_call.1} parent=5 // pred_check_branch
        %161 = sbr.rel (%p159) target = $region24
      $region23: #{tpu_custom_call.1} parent=5 // pred_region
        // Predicated region
        $region25: #{tpu_custom_call.1} parent=23 // pred_check
          %p162 = pneg %p33
        $region26: #{tpu_custom_call.1} parent=23 // pred_check_branch
          %164 = sbr.rel (%p162) target = $region28
        $region27: #{tpu_custom_call.1} parent=23 // pred_region
          %s165 = smul.u32 32, %s13
          %s166 = ssub.s32 97, %s165
          %p167 = scmp.lt.s32.totalorder %s166, 32
          %s168 = scalar_select %p167, %s166, 32
          %s169 = smul.u32 128, %s168
          %p170 = scmp.lt.s32.totalorder %s165, 96
          %s171 = scalar_select %p170, %s165, 96
          %s172 = smul.addr %s171, 8
          %s173 = scalar_lea.vmem %s0, %s172
          %s174 = smul.u32 32, %s13
          %s175 = ssub.s32 97, %s174
          %p176 = scmp.lt.s32.totalorder %s175, 32
          %s177 = scalar_select %p176, %s175, 32
          %s178 = smul.u32 128, %s177
        $region28: #{tpu_custom_call.1} parent=23 // pred_fallthru
          _
        // Predicated region
        $region29: #{tpu_custom_call.1} parent=23 // pred_check
          %p179 = pneg %p63
        $region30: #{tpu_custom_call.1} parent=23 // pred_check_branch
          %181 = sbr.rel (%p179) target = $region32
        $region31: #{tpu_custom_call.1} parent=23 // pred_region
          %s182 = sadd.s32 %s13, 1
          %s183 = smul.u32 %s182, 32
          %p184 = scmp.lt.s32.totalorder %s183, 96
          %s185 = scalar_select %p184, %s183, 96
          %s186 = smul.addr %s185, 8
          %s187 = scalar_lea.vmem %s1, %s186
          %s188 = sadd.s32 %s13, 1
          %s189 = smul.u32 %s188, 32
        $region32: #{tpu_custom_call.1} parent=23 // pred_fallthru
          _
      $region24: #{tpu_custom_call.1} parent=5 // pred_fallthru
        _
      %p190 = scmp.le.s32.totalorder 1, %s13
      %p191 = scmp.lt.s32.totalorder %s13, 4
      %p192 = pnand %p190, %p191
      %p193 = pneg %p192
      // Predicated region
      $region33: #{tpu_custom_call.1} parent=5 // pred_check
        _
      $region34: #{tpu_custom_call.1} parent=5 // pred_check_branch
        %195 = sbr.rel (%p192) target = $region36
      $region35: #{tpu_custom_call.1} parent=5 // pred_region
        %s196 = ssub.s32 %s13, 1
        %s197 = smul.u32 32, %s18
        %s198 = ssub.s32 97, %s197
        %p199 = scmp.lt.s32.totalorder %s198, 32
        %s200 = scalar_select %p199, %s198, 32
        %s201 = smul.u32 128, %s200
        %p202 = scmp.lt.s32.totalorder %s197, 96
        %s203 = scalar_select %p202, %s197, 96
        %s204 = smul.addr %s203, 8
        %s205 = scalar_lea.vmem %s0, %s204
        %p206 = pneg %p39
        %p207 = pneg %p36
        %s208 = sadd.s32 %s18, 1
        %s209 = smul.u32 %s208, 32
        %p210 = scmp.lt.s32.totalorder %s209, 96
        %s211 = scalar_select %p210, %s209, 96
        %s212 = smul.addr %s211, 8
        %s213 = scalar_lea.vmem %s1, %s212
        %p214 = pneg %p69
        %p215 = pneg %p66
        %p216 = pneg %p90
        %p217 = pneg %p87
        %p218 = pneg %p111
        %p219 = pneg %p108
        %p220 = pneg %p137
        %p221 = pneg %p134
        %s222 = sand.u32 %s124, 1
        %s223 = scalar_lea.sflag [#allocation5], %s222
        %s224 = sand.u32 %s124, 1
        %s225 = smul.addr %s224, 256
        %s226 = scalar_lea.vmem [#allocation4], %s225
        %s227 = smul.u32 32, %s18
        %s228 = ssub.s32 97, %s227
        %p229 = scmp.lt.s32.totalorder %s228, 32
        %s230 = scalar_select %p229, %s228, 32
        %s231 = smul.u32 128, %s230
        %p232 = scmp.lt.s32.totalorder %s227, 96
        %s233 = scalar_select %p232, %s227, 96
        %s234 = smul.addr %s233, 8
        %s235 = scalar_lea.vmem %s0, %s234
        %s236 = smul.u32 32, %s18
        %s237 = ssub.s32 97, %s236
        %p238 = scmp.lt.s32.totalorder %s237, 32
        %s239 = scalar_select %p238, %s237, 32
        %s240 = smul.u32 128, %s239
        %s241 = sadd.s32 %s18, 1
        %s242 = smul.u32 %s241, 32
        %p243 = scmp.lt.s32.totalorder %s242, 96
        %s244 = scalar_select %p243, %s242, 96
        %s245 = smul.addr %s244, 8
        %s246 = scalar_lea.vmem %s1, %s245
        %s247 = sadd.s32 %s18, 1
        %s248 = smul.u32 %s247, 32
        %s249 = smul.u32 32, %s18
        %v250 = vld [vmem:[%s235] sm:$0xff]
        %v251 = vld [vmem:[%s235 + $0x8] sm:$0xff]
        %v252 = vld [vmem:[%s235 + $0x10] sm:$0xff]
        %v253 = vld [vmem:[%s235 + $0x18] sm:$0xff]
        %v254 = vld [vmem:[%s235 + $0x20] sm:$0xff]
        %v255 = vld [vmem:[%s235 + $0x28] sm:$0xff]
        %v256 = vld [vmem:[%s235 + $0x30] sm:$0xff]
        %v257 = vld [vmem:[%s235 + $0x38] sm:$0xff]
        %v258 = vld [vmem:[%s235 + $0x40] sm:$0xff]
        %v259 = vld [vmem:[%s235 + $0x48] sm:$0xff]
        %v260 = vld [vmem:[%s235 + $0x50] sm:$0xff]
        %v261 = vld [vmem:[%s235 + $0x58] sm:$0xff]
        %v262 = vld [vmem:[%s235 + $0x60] sm:$0xff]
        %v263 = vld [vmem:[%s235 + $0x68] sm:$0xff]
        %v264 = vld [vmem:[%s235 + $0x70] sm:$0xff]
        %v265 = vld [vmem:[%s235 + $0x78] sm:$0xff]
        %v266 = vld [vmem:[%s235 + $0x80] sm:$0xff]
        %v267 = vld [vmem:[%s235 + $0x88] sm:$0xff]
        %v268 = vld [vmem:[%s235 + $0x90] sm:$0xff]
        %v269 = vld [vmem:[%s235 + $0x98] sm:$0xff]
        %v270 = vld [vmem:[%s235 + $0xa0] sm:$0xff]
        %v271 = vld [vmem:[%s235 + $0xa8] sm:$0xff]
        %v272 = vld [vmem:[%s235 + $0xb0] sm:$0xff]
        %v273 = vld [vmem:[%s235 + $0xb8] sm:$0xff]
        %v274 = vld [vmem:[%s235 + $0xc0] sm:$0xff]
        %v275 = vld [vmem:[%s235 + $0xc8] sm:$0xff]
        %v276 = vld [vmem:[%s235 + $0xd0] sm:$0xff]
        %v277 = vld [vmem:[%s235 + $0xd8] sm:$0xff]
        %v278 = vld [vmem:[%s235 + $0xe0] sm:$0xff]
        %v279 = vld [vmem:[%s235 + $0xe8] sm:$0xff]
        %v280 = vld [vmem:[%s235 + $0xf0] sm:$0xff]
        %v281 = vld [vmem:[%s235 + $0xf8] sm:$0xff]
        %vm282 = vcmask 523264
        %283 = vst.msk [vmem:[#allocation3] sm:$0xff] %vm282, %v250
        %284 = vst.msk [vmem:[#allocation3 + $0x8] sm:$0xff] %vm282, %v251
        %285 = vst.msk [vmem:[#allocation3 + $0x10] sm:$0xff] %vm282, %v252
        %286 = vst.msk [vmem:[#allocation3 + $0x18] sm:$0xff] %vm282, %v253
        %287 = vst.msk [vmem:[#allocation3 + $0x20] sm:$0xff] %vm282, %v254
        %288 = vst.msk [vmem:[#allocation3 + $0x28] sm:$0xff] %vm282, %v255
        %289 = vst.msk [vmem:[#allocation3 + $0x30] sm:$0xff] %vm282, %v256
        %290 = vst.msk [vmem:[#allocation3 + $0x38] sm:$0xff] %vm282, %v257
        %291 = vst.msk [vmem:[#allocation3 + $0x40] sm:$0xff] %vm282, %v258
        %292 = vst.msk [vmem:[#allocation3 + $0x48] sm:$0xff] %vm282, %v259
        %293 = vst.msk [vmem:[#allocation3 + $0x50] sm:$0xff] %vm282, %v260
        %294 = vst.msk [vmem:[#allocation3 + $0x58] sm:$0xff] %vm282, %v261
        %295 = vst.msk [vmem:[#allocation3 + $0x60] sm:$0xff] %vm282, %v262
        %296 = vst.msk [vmem:[#allocation3 + $0x68] sm:$0xff] %vm282, %v263
        %297 = vst.msk [vmem:[#allocation3 + $0x70] sm:$0xff] %vm282, %v264
        %298 = vst.msk [vmem:[#allocation3 + $0x78] sm:$0xff] %vm282, %v265
        %299 = vst.msk [vmem:[#allocation3 + $0x80] sm:$0xff] %vm282, %v266
        %300 = vst.msk [vmem:[#allocation3 + $0x88] sm:$0xff] %vm282, %v267
        %301 = vst.msk [vmem:[#allocation3 + $0x90] sm:$0xff] %vm282, %v268
        %302 = vst.msk [vmem:[#allocation3 + $0x98] sm:$0xff] %vm282, %v269
        %303 = vst.msk [vmem:[#allocation3 + $0xa0] sm:$0xff] %vm282, %v270
        %304 = vst.msk [vmem:[#allocation3 + $0xa8] sm:$0xff] %vm282, %v271
        %305 = vst.msk [vmem:[#allocation3 + $0xb0] sm:$0xff] %vm282, %v272
        %306 = vst.msk [vmem:[#allocation3 + $0xb8] sm:$0xff] %vm282, %v273
        %307 = vst.msk [vmem:[#allocation3 + $0xc0] sm:$0xff] %vm282, %v274
        %308 = vst.msk [vmem:[#allocation3 + $0xc8] sm:$0xff] %vm282, %v275
        %309 = vst.msk [vmem:[#allocation3 + $0xd0] sm:$0xff] %vm282, %v276
        %310 = vst.msk [vmem:[#allocation3 + $0xd8] sm:$0xff] %vm282, %v277
        %311 = vst.msk [vmem:[#allocation3 + $0xe0] sm:$0xff] %vm282, %v278
        %312 = vst.msk [vmem:[#allocation3 + $0xe8] sm:$0xff] %vm282, %v279
        %313 = vst.msk [vmem:[#allocation3 + $0xf0] sm:$0xff] %vm282, %v280
        %314 = vst.msk [vmem:[#allocation3 + $0xf8] sm:$0xff] %vm282, %v281
        %v315 = vld [vmem:[%s246] sm:$0xff]
        %316 = vst.msk [vmem:[#allocation3 + $0x100] sm:$0xff] %vm282, %v315
        %v317 = vld [vmem:[%s3] sm:$0x1]
        %v319 = vlaneseq
        %v320 = vshrl.u32 %v319, 7
        %v321 = vsub.s32 0, %v320
        %v322 = vrot.slane %v317, %v321
        %324 = vst [vmem:[#allocation2] sm:$0xff] %v322
        %325 = vst [vmem:[#allocation2 + $0x8] sm:$0xff] %v322
        %326 = vst [vmem:[#allocation2 + $0x10] sm:$0xff] %v322
        %327 = vst [vmem:[#allocation2 + $0x18] sm:$0xff] %v322
        %328 = vst [vmem:[#allocation2 + $0x20] sm:$0xff] %v322
        %329 = vst [vmem:[#allocation2 + $0x28] sm:$0xff] %v322
        %330 = vst [vmem:[#allocation2 + $0x30] sm:$0xff] %v322
        %331 = vst [vmem:[#allocation2 + $0x38] sm:$0xff] %v322
        %332 = vst [vmem:[#allocation2 + $0x40] sm:$0xff] %v322
        %333 = vst [vmem:[#allocation2 + $0x48] sm:$0xff] %v322
        %334 = vst [vmem:[#allocation2 + $0x50] sm:$0xff] %v322
        %335 = vst [vmem:[#allocation2 + $0x58] sm:$0xff] %v322
        %336 = vst [vmem:[#allocation2 + $0x60] sm:$0xff] %v322
        %337 = vst [vmem:[#allocation2 + $0x68] sm:$0xff] %v322
        %338 = vst [vmem:[#allocation2 + $0x70] sm:$0xff] %v322
        %339 = vst [vmem:[#allocation2 + $0x78] sm:$0xff] %v322
        %340 = vst [vmem:[#allocation2 + $0x80] sm:$0xff] %v322
        %341 = vst [vmem:[#allocation2 + $0x88] sm:$0xff] %v322
        %342 = vst [vmem:[#allocation2 + $0x90] sm:$0xff] %v322
        %343 = vst [vmem:[#allocation2 + $0x98] sm:$0xff] %v322
        %344 = vst [vmem:[#allocation2 + $0xa0] sm:$0xff] %v322
        %345 = vst [vmem:[#allocation2 + $0xa8] sm:$0xff] %v322
        %346 = vst [vmem:[#allocation2 + $0xb0] sm:$0xff] %v322
        %347 = vst [vmem:[#allocation2 + $0xb8] sm:$0xff] %v322
        %348 = vst [vmem:[#allocation2 + $0xc0] sm:$0xff] %v322
        %349 = vst [vmem:[#allocation2 + $0xc8] sm:$0xff] %v322
        %350 = vst [vmem:[#allocation2 + $0xd0] sm:$0xff] %v322
        %351 = vst [vmem:[#allocation2 + $0xd8] sm:$0xff] %v322
        %352 = vst [vmem:[#allocation2 + $0xe0] sm:$0xff] %v322
        %353 = vst [vmem:[#allocation2 + $0xe8] sm:$0xff] %v322
        %354 = vst [vmem:[#allocation2 + $0xf0] sm:$0xff] %v322
        %355 = vst [vmem:[#allocation2 + $0xf8] sm:$0xff] %v322
        %v356 = vld [vmem:[#allocation3] sm:$0xff]
        %v357 = vld [vmem:[#allocation3 + $0x8] sm:$0xff]
        %v358 = vld [vmem:[#allocation3 + $0x10] sm:$0xff]
        %v359 = vld [vmem:[#allocation3 + $0x18] sm:$0xff]
        %v360 = vld [vmem:[#allocation3 + $0x20] sm:$0xff]
        %v361 = vld [vmem:[#allocation3 + $0x28] sm:$0xff]
        %v362 = vld [vmem:[#allocation3 + $0x30] sm:$0xff]
        %v363 = vld [vmem:[#allocation3 + $0x38] sm:$0xff]
        %v364 = vld [vmem:[#allocation3 + $0x40] sm:$0xff]
        %v365 = vld [vmem:[#allocation3 + $0x48] sm:$0xff]
        %v366 = vld [vmem:[#allocation3 + $0x50] sm:$0xff]
        %v367 = vld [vmem:[#allocation3 + $0x58] sm:$0xff]
        %v368 = vld [vmem:[#allocation3 + $0x60] sm:$0xff]
        %v369 = vld [vmem:[#allocation3 + $0x68] sm:$0xff]
        %v370 = vld [vmem:[#allocation3 + $0x70] sm:$0xff]
        %v371 = vld [vmem:[#allocation3 + $0x78] sm:$0xff]
        %v372 = vld [vmem:[#allocation3 + $0x80] sm:$0xff]
        %v373 = vld [vmem:[#allocation3 + $0x88] sm:$0xff]
        %v374 = vld [vmem:[#allocation3 + $0x90] sm:$0xff]
        %v375 = vld [vmem:[#allocation3 + $0x98] sm:$0xff]
        %v376 = vld [vmem:[#allocation3 + $0xa0] sm:$0xff]
        %v377 = vld [vmem:[#allocation3 + $0xa8] sm:$0xff]
        %v378 = vld [vmem:[#allocation3 + $0xb0] sm:$0xff]
        %v379 = vld [vmem:[#allocation3 + $0xb8] sm:$0xff]
        %v380 = vld [vmem:[#allocation3 + $0xc0] sm:$0xff]
        %v381 = vld [vmem:[#allocation3 + $0xc8] sm:$0xff]
        %v382 = vld [vmem:[#allocation3 + $0xd0] sm:$0xff]
        %v383 = vld [vmem:[#allocation3 + $0xd8] sm:$0xff]
        %v384 = vld [vmem:[#allocation3 + $0xe0] sm:$0xff]
        %v385 = vld [vmem:[#allocation3 + $0xe8] sm:$0xff]
        %v386 = vld [vmem:[#allocation3 + $0xf0] sm:$0xff]
        %v387 = vld [vmem:[#allocation3 + $0xf8] sm:$0xff]
        %v388 = vld [vmem:[#allocation2] sm:$0xff]
        %v389 = vld [vmem:[#allocation2 + $0x8] sm:$0xff]
        %v390 = vld [vmem:[#allocation2 + $0x10] sm:$0xff]
        %v391 = vld [vmem:[#allocation2 + $0x18] sm:$0xff]
        %v392 = vld [vmem:[#allocation2 + $0x20] sm:$0xff]
        %v393 = vld [vmem:[#allocation2 + $0x28] sm:$0xff]
        %v394 = vld [vmem:[#allocation2 + $0x30] sm:$0xff]
        %v395 = vld [vmem:[#allocation2 + $0x38] sm:$0xff]
        %v396 = vld [vmem:[#allocation2 + $0x40] sm:$0xff]
        %v397 = vld [vmem:[#allocation2 + $0x48] sm:$0xff]
        %v398 = vld [vmem:[#allocation2 + $0x50] sm:$0xff]
        %v399 = vld [vmem:[#allocation2 + $0x58] sm:$0xff]
        %v400 = vld [vmem:[#allocation2 + $0x60] sm:$0xff]
        %v401 = vld [vmem:[#allocation2 + $0x68] sm:$0xff]
        %v402 = vld [vmem:[#allocation2 + $0x70] sm:$0xff]
        %v403 = vld [vmem:[#allocation2 + $0x78] sm:$0xff]
        %v404 = vld [vmem:[#allocation2 + $0x80] sm:$0xff]
        %v405 = vld [vmem:[#allocation2 + $0x88] sm:$0xff]
        %v406 = vld [vmem:[#allocation2 + $0x90] sm:$0xff]
        %v407 = vld [vmem:[#allocation2 + $0x98] sm:$0xff]
        %v408 = vld [vmem:[#allocation2 + $0xa0] sm:$0xff]
        %v409 = vld [vmem:[#allocation2 + $0xa8] sm:$0xff]
        %v410 = vld [vmem:[#allocation2 + $0xb0] sm:$0xff]
        %v411 = vld [vmem:[#allocation2 + $0xb8] sm:$0xff]
        %v412 = vld [vmem:[#allocation2 + $0xc0] sm:$0xff]
        %v413 = vld [vmem:[#allocation2 + $0xc8] sm:$0xff]
        %v414 = vld [vmem:[#allocation2 + $0xd0] sm:$0xff]
        %v415 = vld [vmem:[#allocation2 + $0xd8] sm:$0xff]
        %v416 = vld [vmem:[#allocation2 + $0xe0] sm:$0xff]
        %v417 = vld [vmem:[#allocation2 + $0xe8] sm:$0xff]
        %v418 = vld [vmem:[#allocation2 + $0xf0] sm:$0xff]
        %v419 = vld [vmem:[#allocation2 + $0xf8] sm:$0xff]
        %v420 = vld [vmem:[%s2] sm:$0xff]
        %v421 = vld [vmem:[%s2 + $0x8] sm:$0xff]
        %v422 = vld [vmem:[%s2 + $0x10] sm:$0xff]
        %v423 = vld [vmem:[%s2 + $0x18] sm:$0xff]
        %v424 = vld [vmem:[%s2 + $0x20] sm:$0xff]
        %v425 = vld [vmem:[%s2 + $0x28] sm:$0xff]
        %v426 = vld [vmem:[%s2 + $0x30] sm:$0xff]
        %v427 = vld [vmem:[%s2 + $0x38] sm:$0xff]
        %v429 = vsel %vm282, %v356, 0
        %v432 = vsel %vm282, %v357, 0
        %v435 = vsel %vm282, %v358, 0
        %v438 = vsel %vm282, %v359, 0
        %v441 = vsel %vm282, %v360, 0
        %v444 = vsel %vm282, %v361, 0
        %v447 = vsel %vm282, %v362, 0
        %v450 = vsel %vm282, %v363, 0
        %v453 = vsel %vm282, %v364, 0
        %v456 = vsel %vm282, %v365, 0
        %v459 = vsel %vm282, %v366, 0
        %v462 = vsel %vm282, %v367, 0
        %v465 = vsel %vm282, %v368, 0
        %v468 = vsel %vm282, %v369, 0
        %v471 = vsel %vm282, %v370, 0
        %v474 = vsel %vm282, %v371, 0
        %v477 = vsel %vm282, %v372, 0
        %v480 = vsel %vm282, %v373, 0
        %v483 = vsel %vm282, %v374, 0
        %v486 = vsel %vm282, %v375, 0
        %v489 = vsel %vm282, %v376, 0
        %v492 = vsel %vm282, %v377, 0
        %v495 = vsel %vm282, %v378, 0
        %v498 = vsel %vm282, %v379, 0
        %v501 = vsel %vm282, %v380, 0
        %v504 = vsel %vm282, %v381, 0
        %v507 = vsel %vm282, %v382, 0
        %v510 = vsel %vm282, %v383, 0
        %v513 = vsel %vm282, %v384, 0
        %v516 = vsel %vm282, %v385, 0
        %v519 = vsel %vm282, %v386, 0
        %v522 = vsel %vm282, %v387, 0
        %524 = vmatprep.subr.mxu0 0.0
        %525 = vmatpush1.msra.mxu0 0.0
        %526 = vmatprep.subr.mxu0 0.0
        %527 = vmatpush1.msra.mxu0 0.0
        %528 = vmatprep.subr.mxu0 0.0
        %529 = vmatpush1.msra.mxu0 0.0
        %530 = vmatprep.subr.mxu0 0.0
        %531 = vmatpush1.msra.mxu0 0.0
        %532 = vmatprep.subr.mxu0 0.0
        %533 = vmatpush1.msra.mxu0 0.0
        %534 = vmatprep.subr.mxu0 0.0
        %535 = vmatpush1.msra.mxu0 0.0
        %536 = vmatprep.subr.mxu0 0.0
        %537 = vmatpush1.msra.mxu0 0.0
        %538 = vmatprep.subr.mxu0 0.0
        %539 = vmatpush1.msra.mxu0 0.0
        %540 = vmatprep.subr.mxu0 0.0
        %541 = vmatpush1.msra.mxu0 %v427
        %542 = vmatprep.subr.mxu0 0.0
        %543 = vmatpush1.msra.mxu0 %v426
        %544 = vmatprep.subr.mxu0 0.0
        %545 = vmatpush1.msra.mxu0 %v425
        %546 = vmatprep.subr.mxu0 0.0
        %547 = vmatpush1.msra.mxu0 %v424
        %548 = vmatprep.subr.mxu0 0.0
        %549 = vmatpush1.msra.mxu0 %v423
        %550 = vmatprep.subr.mxu0 0.0
        %551 = vmatpush1.msra.mxu0 %v422
        %552 = vmatprep.subr.mxu0 0.0
        %553 = vmatpush1.msra.mxu0 %v421
        %554 = vmatprep.subr.mxu0 0.0
        %555 = vmatpush1.msra.mxu0 %v420
        %556 = vmatprep.subr.mxu0 0.0
        %557 = vmatpush2.msra.mxu0 0.0
        %558 = vmatprep.subr.mxu0 0.0
        %559 = vmatpush2.msra.mxu0 0.0
        %560 = vmatprep.subr.mxu0 0.0
        %561 = vmatpush2.msra.mxu0 0.0
        %562 = vmatprep.subr.mxu0 0.0
        %563 = vmatpush2.msra.mxu0 0.0
        %564 = vmatprep.subr.mxu0 0.0
        %565 = vmatpush2.msra.mxu0 0.0
        %566 = vmatprep.subr.mxu0 0.0
        %567 = vmatpush2.msra.mxu0 0.0
        %568 = vmatprep.subr.mxu0 0.0
        %569 = vmatpush2.msra.mxu0 0.0
        %570 = vmatprep.subr.mxu0 0.0
        %571 = vmatpush2.msra.mxu0 0.0
        %572 = vmatprep.subr.mxu0 0.0
        %573 = vmatpush2.msra.mxu0 0.0
        %574 = vmatprep.subr.mxu0 0.0
        %575 = vmatpush2.msra.mxu0 0.0
        %576 = vmatprep.subr.mxu0 0.0
        %577 = vmatpush2.msra.mxu0 0.0
        %578 = vmatprep.subr.mxu0 0.0
        %579 = vmatpush2.msra.mxu0 0.0
        %580 = vmatprep.subr.mxu0 0.0
        %581 = vmatpush2.msra.mxu0 0.0
        %582 = vmatprep.subr.mxu0 0.0
        %583 = vmatpush2.msra.mxu0 0.0
        %584 = vmatprep.subr.mxu0 0.0
        %585 = vmatpush2.msra.mxu0 0.0
        %586 = vmatprep.subr.mxu0 0.0
        %587 = vmatpush2.msra.mxu0 0.0
        %588 = vmatprep.mubr.f32.mxu0 0.0
        %589 = vmatmul.mubr.f32.gmra.mxu0 %v429
        %v590 = vpop.f32.mrf.mxu0
        %v591 = vadd.f32 0.0, %v590
        %v592 = vpop.f32.mrf.mxu0
        %593 = vmatprep.mubr.f32.mxu0 0.0
        %594 = vmatmul.mubr.f32.gmra.mxu0 %v432
        %v595 = vpop.f32.mrf.mxu0
        %v596 = vadd.f32 0.0, %v595
        %v597 = vpop.f32.mrf.mxu0
        %598 = vmatprep.mubr.f32.mxu0 0.0
        %599 = vmatmul.mubr.f32.gmra.mxu0 %v435
        %v600 = vpop.f32.mrf.mxu0
        %v601 = vadd.f32 0.0, %v600
        %v602 = vpop.f32.mrf.mxu0
        %603 = vmatprep.mubr.f32.mxu0 0.0
        %604 = vmatmul.mubr.f32.gmra.mxu0 %v438
        %v605 = vpop.f32.mrf.mxu0
        %v606 = vadd.f32 0.0, %v605
        %v607 = vpop.f32.mrf.mxu0
        %608 = vmatprep.mubr.f32.mxu0 0.0
        %609 = vmatmul.mubr.f32.gmra.mxu0 %v441
        %v610 = vpop.f32.mrf.mxu0
        %v611 = vadd.f32 0.0, %v610
        %v612 = vpop.f32.mrf.mxu0
        %613 = vmatprep.mubr.f32.mxu0 0.0
        %614 = vmatmul.mubr.f32.gmra.mxu0 %v444
        %v615 = vpop.f32.mrf.mxu0
        %v616 = vadd.f32 0.0, %v615
        %v617 = vpop.f32.mrf.mxu0
        %618 = vmatprep.mubr.f32.mxu0 0.0
        %619 = vmatmul.mubr.f32.gmra.mxu0 %v447
        %v620 = vpop.f32.mrf.mxu0
        %v621 = vadd.f32 0.0, %v620
        %v622 = vpop.f32.mrf.mxu0
        %623 = vmatprep.mubr.f32.mxu0 0.0
        %624 = vmatmul.mubr.f32.gmra.mxu0 %v450
        %v625 = vpop.f32.mrf.mxu0
        %v626 = vadd.f32 0.0, %v625
        %v627 = vpop.f32.mrf.mxu0
        %628 = vmatprep.mubr.f32.mxu0 0.0
        %629 = vmatmul.mubr.f32.gmra.mxu0 %v453
        %v630 = vpop.f32.mrf.mxu0
        %v631 = vadd.f32 0.0, %v630
        %v632 = vpop.f32.mrf.mxu0
        %633 = vmatprep.mubr.f32.mxu0 0.0
        %634 = vmatmul.mubr.f32.gmra.mxu0 %v456
        %v635 = vpop.f32.mrf.mxu0
        %v636 = vadd.f32 0.0, %v635
        %v637 = vpop.f32.mrf.mxu0
        %638 = vmatprep.mubr.f32.mxu0 0.0
        %639 = vmatmul.mubr.f32.gmra.mxu0 %v459
        %v640 = vpop.f32.mrf.mxu0
        %v641 = vadd.f32 0.0, %v640
        %v642 = vpop.f32.mrf.mxu0
        %643 = vmatprep.mubr.f32.mxu0 0.0
        %644 = vmatmul.mubr.f32.gmra.mxu0 %v462
        %v645 = vpop.f32.mrf.mxu0
        %v646 = vadd.f32 0.0, %v645
        %v647 = vpop.f32.mrf.mxu0
        %648 = vmatprep.mubr.f32.mxu0 0.0
        %649 = vmatmul.mubr.f32.gmra.mxu0 %v465
        %v650 = vpop.f32.mrf.mxu0
        %v651 = vadd.f32 0.0, %v650
        %v652 = vpop.f32.mrf.mxu0
        %653 = vmatprep.mubr.f32.mxu0 0.0
        %654 = vmatmul.mubr.f32.gmra.mxu0 %v468
        %v655 = vpop.f32.mrf.mxu0
        %v656 = vadd.f32 0.0, %v655
        %v657 = vpop.f32.mrf.mxu0
        %658 = vmatprep.mubr.f32.mxu0 0.0
        %659 = vmatmul.mubr.f32.gmra.mxu0 %v471
        %v660 = vpop.f32.mrf.mxu0
        %v661 = vadd.f32 0.0, %v660
        %v662 = vpop.f32.mrf.mxu0
        %663 = vmatprep.mubr.f32.mxu0 0.0
        %664 = vmatmul.mubr.f32.gmra.mxu0 %v474
        %v665 = vpop.f32.mrf.mxu0
        %v666 = vadd.f32 0.0, %v665
        %v667 = vpop.f32.mrf.mxu0
        %668 = vmatprep.mubr.f32.mxu0 0.0
        %669 = vmatmul.mubr.f32.gmra.mxu0 %v477
        %v670 = vpop.f32.mrf.mxu0
        %v671 = vadd.f32 0.0, %v670
        %v672 = vpop.f32.mrf.mxu0
        %673 = vmatprep.mubr.f32.mxu0 0.0
        %674 = vmatmul.mubr.f32.gmra.mxu0 %v480
        %v675 = vpop.f32.mrf.mxu0
        %v676 = vadd.f32 0.0, %v675
        %v677 = vpop.f32.mrf.mxu0
        %678 = vmatprep.mubr.f32.mxu0 0.0
        %679 = vmatmul.mubr.f32.gmra.mxu0 %v483
        %v680 = vpop.f32.mrf.mxu0
        %v681 = vadd.f32 0.0, %v680
        %v682 = vpop.f32.mrf.mxu0
        %683 = vmatprep.mubr.f32.mxu0 0.0
        %684 = vmatmul.mubr.f32.gmra.mxu0 %v486
        %v685 = vpop.f32.mrf.mxu0
        %v686 = vadd.f32 0.0, %v685
        %v687 = vpop.f32.mrf.mxu0
        %688 = vmatprep.mubr.f32.mxu0 0.0
        %689 = vmatmul.mubr.f32.gmra.mxu0 %v489
        %v690 = vpop.f32.mrf.mxu0
        %v691 = vadd.f32 0.0, %v690
        %v692 = vpop.f32.mrf.mxu0
        %693 = vmatprep.mubr.f32.mxu0 0.0
        %694 = vmatmul.mubr.f32.gmra.mxu0 %v492
        %v695 = vpop.f32.mrf.mxu0
        %v696 = vadd.f32 0.0, %v695
        %v697 = vpop.f32.mrf.mxu0
        %698 = vmatprep.mubr.f32.mxu0 0.0
        %699 = vmatmul.mubr.f32.gmra.mxu0 %v495
        %v700 = vpop.f32.mrf.mxu0
        %v701 = vadd.f32 0.0, %v700
        %v702 = vpop.f32.mrf.mxu0
        %703 = vmatprep.mubr.f32.mxu0 0.0
        %704 = vmatmul.mubr.f32.gmra.mxu0 %v498
        %v705 = vpop.f32.mrf.mxu0
        %v706 = vadd.f32 0.0, %v705
        %v707 = vpop.f32.mrf.mxu0
        %708 = vmatprep.mubr.f32.mxu0 0.0
        %709 = vmatmul.mubr.f32.gmra.mxu0 %v501
        %v710 = vpop.f32.mrf.mxu0
        %v711 = vadd.f32 0.0, %v710
        %v712 = vpop.f32.mrf.mxu0
        %713 = vmatprep.mubr.f32.mxu0 0.0
        %714 = vmatmul.mubr.f32.gmra.mxu0 %v504
        %v715 = vpop.f32.mrf.mxu0
        %v716 = vadd.f32 0.0, %v715
        %v717 = vpop.f32.mrf.mxu0
        %718 = vmatprep.mubr.f32.mxu0 0.0
        %719 = vmatmul.mubr.f32.gmra.mxu0 %v507
        %v720 = vpop.f32.mrf.mxu0
        %v721 = vadd.f32 0.0, %v720
        %v722 = vpop.f32.mrf.mxu0
        %723 = vmatprep.mubr.f32.mxu0 0.0
        %724 = vmatmul.mubr.f32.gmra.mxu0 %v510
        %v725 = vpop.f32.mrf.mxu0
        %v726 = vadd.f32 0.0, %v725
        %v727 = vpop.f32.mrf.mxu0
        %728 = vmatprep.mubr.f32.mxu0 0.0
        %729 = vmatmul.mubr.f32.gmra.mxu0 %v513
        %v730 = vpop.f32.mrf.mxu0
        %v731 = vadd.f32 0.0, %v730
        %v732 = vpop.f32.mrf.mxu0
        %733 = vmatprep.mubr.f32.mxu0 0.0
        %734 = vmatmul.mubr.f32.gmra.mxu0 %v516
        %v735 = vpop.f32.mrf.mxu0
        %v736 = vadd.f32 0.0, %v735
        %v737 = vpop.f32.mrf.mxu0
        %738 = vmatprep.mubr.f32.mxu0 0.0
        %739 = vmatmul.mubr.f32.gmra.mxu0 %v519
        %v740 = vpop.f32.mrf.mxu0
        %v741 = vadd.f32 0.0, %v740
        %v742 = vpop.f32.mrf.mxu0
        %743 = vmatprep.mubr.f32.mxu0 0.0
        %744 = vmatmul.mubr.f32.gmra.mxu0 %v522
        %v745 = vpop.f32.mrf.mxu0
        %v746 = vadd.f32 0.0, %v745
        %v747 = vpop.f32.mrf.mxu0
        %748 = vdwg.mxu0
        %v749 = vadd.f32 %v388, %v591
        %v750 = vadd.f32 %v389, %v596
        %v751 = vadd.f32 %v390, %v601
        %v752 = vadd.f32 %v391, %v606
        %v753 = vadd.f32 %v392, %v611
        %v754 = vadd.f32 %v393, %v616
        %v755 = vadd.f32 %v394, %v621
        %v756 = vadd.f32 %v395, %v626
        %v757 = vadd.f32 %v396, %v631
        %v758 = vadd.f32 %v397, %v636
        %v759 = vadd.f32 %v398, %v641
        %v760 = vadd.f32 %v399, %v646
        %v761 = vadd.f32 %v400, %v651
        %v762 = vadd.f32 %v401, %v656
        %v763 = vadd.f32 %v402, %v661
        %v764 = vadd.f32 %v403, %v666
        %v765 = vadd.f32 %v404, %v671
        %v766 = vadd.f32 %v405, %v676
        %v767 = vadd.f32 %v406, %v681
        %v768 = vadd.f32 %v407, %v686
        %v769 = vadd.f32 %v408, %v691
        %v770 = vadd.f32 %v409, %v696
        %v771 = vadd.f32 %v410, %v701
        %v772 = vadd.f32 %v411, %v706
        %v773 = vadd.f32 %v412, %v711
        %v774 = vadd.f32 %v413, %v716
        %v775 = vadd.f32 %v414, %v721
        %v776 = vadd.f32 %v415, %v726
        %v777 = vadd.f32 %v416, %v731
        %v778 = vadd.f32 %v417, %v736
        %v779 = vadd.f32 %v418, %v741
        %v780 = vadd.f32 %v419, %v746
        %781 = vst [vmem:[#allocation2] sm:$0xff] %v749
        %782 = vst [vmem:[#allocation2 + $0x8] sm:$0xff] %v750
        %783 = vst [vmem:[#allocation2 + $0x10] sm:$0xff] %v751
        %784 = vst [vmem:[#allocation2 + $0x18] sm:$0xff] %v752
        %785 = vst [vmem:[#allocation2 + $0x20] sm:$0xff] %v753
        %786 = vst [vmem:[#allocation2 + $0x28] sm:$0xff] %v754
        %787 = vst [vmem:[#allocation2 + $0x30] sm:$0xff] %v755
        %788 = vst [vmem:[#allocation2 + $0x38] sm:$0xff] %v756
        %789 = vst [vmem:[#allocation2 + $0x40] sm:$0xff] %v757
        %790 = vst [vmem:[#allocation2 + $0x48] sm:$0xff] %v758
        %791 = vst [vmem:[#allocation2 + $0x50] sm:$0xff] %v759
        %792 = vst [vmem:[#allocation2 + $0x58] sm:$0xff] %v760
        %793 = vst [vmem:[#allocation2 + $0x60] sm:$0xff] %v761
        %794 = vst [vmem:[#allocation2 + $0x68] sm:$0xff] %v762
        %795 = vst [vmem:[#allocation2 + $0x70] sm:$0xff] %v763
        %796 = vst [vmem:[#allocation2 + $0x78] sm:$0xff] %v764
        %797 = vst [vmem:[#allocation2 + $0x80] sm:$0xff] %v765
        %798 = vst [vmem:[#allocation2 + $0x88] sm:$0xff] %v766
        %799 = vst [vmem:[#allocation2 + $0x90] sm:$0xff] %v767
        %800 = vst [vmem:[#allocation2 + $0x98] sm:$0xff] %v768
        %801 = vst [vmem:[#allocation2 + $0xa0] sm:$0xff] %v769
        %802 = vst [vmem:[#allocation2 + $0xa8] sm:$0xff] %v770
        %803 = vst [vmem:[#allocation2 + $0xb0] sm:$0xff] %v771
        %804 = vst [vmem:[#allocation2 + $0xb8] sm:$0xff] %v772
        %805 = vst [vmem:[#allocation2 + $0xc0] sm:$0xff] %v773
        %806 = vst [vmem:[#allocation2 + $0xc8] sm:$0xff] %v774
        %807 = vst [vmem:[#allocation2 + $0xd0] sm:$0xff] %v775
        %808 = vst [vmem:[#allocation2 + $0xd8] sm:$0xff] %v776
        %809 = vst [vmem:[#allocation2 + $0xe0] sm:$0xff] %v777
        %810 = vst [vmem:[#allocation2 + $0xe8] sm:$0xff] %v778
        %811 = vst [vmem:[#allocation2 + $0xf0] sm:$0xff] %v779
        %812 = vst [vmem:[#allocation2 + $0xf8] sm:$0xff] %v780
        %v813 = vld [vmem:[#allocation3 + $0x2] sm:$0xff]
        %v814 = vld [vmem:[#allocation3 + $0xa] sm:$0xff]
        %v815 = vld [vmem:[#allocation3 + $0x12] sm:$0xff]
        %v816 = vld [vmem:[#allocation3 + $0x1a] sm:$0xff]
        %v817 = vld [vmem:[#allocation3 + $0x22] sm:$0xff]
        %v818 = vld [vmem:[#allocation3 + $0x2a] sm:$0xff]
        %v819 = vld [vmem:[#allocation3 + $0x32] sm:$0xff]
        %v820 = vld [vmem:[#allocation3 + $0x3a] sm:$0xff]
        %v821 = vld [vmem:[#allocation3 + $0x42] sm:$0xff]
        %v822 = vld [vmem:[#allocation3 + $0x4a] sm:$0xff]
        %v823 = vld [vmem:[#allocation3 + $0x52] sm:$0xff]
        %v824 = vld [vmem:[#allocation3 + $0x5a] sm:$0xff]
        %v825 = vld [vmem:[#allocation3 + $0x62] sm:$0xff]
        %v826 = vld [vmem:[#allocation3 + $0x6a] sm:$0xff]
        %v827 = vld [vmem:[#allocation3 + $0x72] sm:$0xff]
        %v828 = vld [vmem:[#allocation3 + $0x7a] sm:$0xff]
        %v829 = vld [vmem:[#allocation3 + $0x82] sm:$0xff]
        %v830 = vld [vmem:[#allocation3 + $0x8a] sm:$0xff]
        %v831 = vld [vmem:[#allocation3 + $0x92] sm:$0xff]
        %v832 = vld [vmem:[#allocation3 + $0x9a] sm:$0xff]
        %v833 = vld [vmem:[#allocation3 + $0xa2] sm:$0xff]
        %v834 = vld [vmem:[#allocation3 + $0xaa] sm:$0xff]
        %v835 = vld [vmem:[#allocation3 + $0xb2] sm:$0xff]
        %v836 = vld [vmem:[#allocation3 + $0xba] sm:$0xff]
        %v837 = vld [vmem:[#allocation3 + $0xc2] sm:$0xff]
        %v838 = vld [vmem:[#allocation3 + $0xca] sm:$0xff]
        %v839 = vld [vmem:[#allocation3 + $0xd2] sm:$0xff]
        %v840 = vld [vmem:[#allocation3 + $0xda] sm:$0xff]
        %v841 = vld [vmem:[#allocation3 + $0xe2] sm:$0xff]
        %v842 = vld [vmem:[#allocation3 + $0xea] sm:$0xff]
        %v843 = vld [vmem:[#allocation3 + $0xf2] sm:$0xff]
        %v844 = vld [vmem:[#allocation3 + $0xfa] sm:$0xff]
        %v845 = vld [vmem:[#allocation2] sm:$0xff]
        %v846 = vld [vmem:[#allocation2 + $0x8] sm:$0xff]
        %v847 = vld [vmem:[#allocation2 + $0x10] sm:$0xff]
        %v848 = vld [vmem:[#allocation2 + $0x18] sm:$0xff]
        %v849 = vld [vmem:[#allocation2 + $0x20] sm:$0xff]
        %v850 = vld [vmem:[#allocation2 + $0x28] sm:$0xff]
        %v851 = vld [vmem:[#allocation2 + $0x30] sm:$0xff]
        %v852 = vld [vmem:[#allocation2 + $0x38] sm:$0xff]
        %v853 = vld [vmem:[#allocation2 + $0x40] sm:$0xff]
        %v854 = vld [vmem:[#allocation2 + $0x48] sm:$0xff]
        %v855 = vld [vmem:[#allocation2 + $0x50] sm:$0xff]
        %v856 = vld [vmem:[#allocation2 + $0x58] sm:$0xff]
        %v857 = vld [vmem:[#allocation2 + $0x60] sm:$0xff]
        %v858 = vld [vmem:[#allocation2 + $0x68] sm:$0xff]
        %v859 = vld [vmem:[#allocation2 + $0x70] sm:$0xff]
        %v860 = vld [vmem:[#allocation2 + $0x78] sm:$0xff]
        %v861 = vld [vmem:[#allocation2 + $0x80] sm:$0xff]
        %v862 = vld [vmem:[#allocation2 + $0x88] sm:$0xff]
        %v863 = vld [vmem:[#allocation2 + $0x90] sm:$0xff]
        %v864 = vld [vmem:[#allocation2 + $0x98] sm:$0xff]
        %v865 = vld [vmem:[#allocation2 + $0xa0] sm:$0xff]
        %v866 = vld [vmem:[#allocation2 + $0xa8] sm:$0xff]
        %v867 = vld [vmem:[#allocation2 + $0xb0] sm:$0xff]
        %v868 = vld [vmem:[#allocation2 + $0xb8] sm:$0xff]
        %v869 = vld [vmem:[#allocation2 + $0xc0] sm:$0xff]
        %v870 = vld [vmem:[#allocation2 + $0xc8] sm:$0xff]
        %v871 = vld [vmem:[#allocation2 + $0xd0] sm:$0xff]
        %v872 = vld [vmem:[#allocation2 + $0xd8] sm:$0xff]
        %v873 = vld [vmem:[#allocation2 + $0xe0] sm:$0xff]
        %v874 = vld [vmem:[#allocation2 + $0xe8] sm:$0xff]
        %v875 = vld [vmem:[#allocation2 + $0xf0] sm:$0xff]
        %v876 = vld [vmem:[#allocation2 + $0xf8] sm:$0xff]
        %s877 = scalar_lea.vmem %s2, 64
        %v878 = vld [vmem:[%s877] sm:$0xff]
        %v879 = vld [vmem:[%s877 + $0x8] sm:$0xff]
        %v880 = vld [vmem:[%s877 + $0x10] sm:$0xff]
        %v881 = vld [vmem:[%s877 + $0x18] sm:$0xff]
        %v882 = vld [vmem:[%s877 + $0x20] sm:$0xff]
        %v883 = vld [vmem:[%s877 + $0x28] sm:$0xff]
        %v884 = vld [vmem:[%s877 + $0x30] sm:$0xff]
        %v885 = vld [vmem:[%s877 + $0x38] sm:$0xff]
        %v887 = vsel %vm282, %v813, 0
        %v890 = vsel %vm282, %v814, 0
        %v893 = vsel %vm282, %v815, 0
        %v896 = vsel %vm282, %v816, 0
        %v899 = vsel %vm282, %v817, 0
        %v902 = vsel %vm282, %v818, 0
        %v905 = vsel %vm282, %v819, 0
        %v908 = vsel %vm282, %v820, 0
        %v911 = vsel %vm282, %v821, 0
        %v914 = vsel %vm282, %v822, 0
        %v917 = vsel %vm282, %v823, 0
        %v920 = vsel %vm282, %v824, 0
        %v923 = vsel %vm282, %v825, 0
        %v926 = vsel %vm282, %v826, 0
        %v929 = vsel %vm282, %v827, 0
        %v932 = vsel %vm282, %v828, 0
        %v935 = vsel %vm282, %v829, 0
        %v938 = vsel %vm282, %v830, 0
        %v941 = vsel %vm282, %v831, 0
        %v944 = vsel %vm282, %v832, 0
        %v947 = vsel %vm282, %v833, 0
        %v950 = vsel %vm282, %v834, 0
        %v953 = vsel %vm282, %v835, 0
        %v956 = vsel %vm282, %v836, 0
        %v959 = vsel %vm282, %v837, 0
        %v962 = vsel %vm282, %v838, 0
        %v965 = vsel %vm282, %v839, 0
        %v968 = vsel %vm282, %v840, 0
        %v971 = vsel %vm282, %v841, 0
        %v974 = vsel %vm282, %v842, 0
        %v977 = vsel %vm282, %v843, 0
        %v980 = vsel %vm282, %v844, 0
        %982 = vmatprep.subr.mxu0 0.0
        %983 = vmatpush1.msra.mxu0 0.0
        %984 = vmatprep.subr.mxu0 0.0
        %985 = vmatpush1.msra.mxu0 0.0
        %986 = vmatprep.subr.mxu0 0.0
        %987 = vmatpush1.msra.mxu0 0.0
        %988 = vmatprep.subr.mxu0 0.0
        %989 = vmatpush1.msra.mxu0 0.0
        %990 = vmatprep.subr.mxu0 0.0
        %991 = vmatpush1.msra.mxu0 0.0
        %992 = vmatprep.subr.mxu0 0.0
        %993 = vmatpush1.msra.mxu0 0.0
        %994 = vmatprep.subr.mxu0 0.0
        %995 = vmatpush1.msra.mxu0 0.0
        %996 = vmatprep.subr.mxu0 0.0
        %997 = vmatpush1.msra.mxu0 0.0
        %998 = vmatprep.subr.mxu0 0.0
        %999 = vmatpush1.msra.mxu0 %v885
        %1000 = vmatprep.subr.mxu0 0.0
        %1001 = vmatpush1.msra.mxu0 %v884
        %1002 = vmatprep.subr.mxu0 0.0
        %1003 = vmatpush1.msra.mxu0 %v883
        %1004 = vmatprep.subr.mxu0 0.0
        %1005 = vmatpush1.msra.mxu0 %v882
        %1006 = vmatprep.subr.mxu0 0.0
        %1007 = vmatpush1.msra.mxu0 %v881
        %1008 = vmatprep.subr.mxu0 0.0
        %1009 = vmatpush1.msra.mxu0 %v880
        %1010 = vmatprep.subr.mxu0 0.0
        %1011 = vmatpush1.msra.mxu0 %v879
        %1012 = vmatprep.subr.mxu0 0.0
        %1013 = vmatpush1.msra.mxu0 %v878
        %1014 = vmatprep.subr.mxu0 0.0
        %1015 = vmatpush2.msra.mxu0 0.0
        %1016 = vmatprep.subr.mxu0 0.0
        %1017 = vmatpush2.msra.mxu0 0.0
        %1018 = vmatprep.subr.mxu0 0.0
        %1019 = vmatpush2.msra.mxu0 0.0
        %1020 = vmatprep.subr.mxu0 0.0
        %1021 = vmatpush2.msra.mxu0 0.0
        %1022 = vmatprep.subr.mxu0 0.0
        %1023 = vmatpush2.msra.mxu0 0.0
        %1024 = vmatprep.subr.mxu0 0.0
        %1025 = vmatpush2.msra.mxu0 0.0
        %1026 = vmatprep.subr.mxu0 0.0
        %1027 = vmatpush2.msra.mxu0 0.0
        %1028 = vmatprep.subr.mxu0 0.0
        %1029 = vmatpush2.msra.mxu0 0.0
        %1030 = vmatprep.subr.mxu0 0.0
        %1031 = vmatpush2.msra.mxu0 0.0
        %1032 = vmatprep.subr.mxu0 0.0
        %1033 = vmatpush2.msra.mxu0 0.0
        %1034 = vmatprep.subr.mxu0 0.0
        %1035 = vmatpush2.msra.mxu0 0.0
        %1036 = vmatprep.subr.mxu0 0.0
        %1037 = vmatpush2.msra.mxu0 0.0
        %1038 = vmatprep.subr.mxu0 0.0
        %1039 = vmatpush2.msra.mxu0 0.0
        %1040 = vmatprep.subr.mxu0 0.0
        %1041 = vmatpush2.msra.mxu0 0.0
        %1042 = vmatprep.subr.mxu0 0.0
        %1043 = vmatpush2.msra.mxu0 0.0
        %1044 = vmatprep.subr.mxu0 0.0
        %1045 = vmatpush2.msra.mxu0 0.0
        %1046 = vmatprep.mubr.f32.mxu0 0.0
        %1047 = vmatmul.mubr.f32.gmra.mxu0 %v887
        %v1048 = vpop.f32.mrf.mxu0
        %v1049 = vadd.f32 0.0, %v1048
        %v1050 = vpop.f32.mrf.mxu0
        %1051 = vmatprep.mubr.f32.mxu0 0.0
        %1052 = vmatmul.mubr.f32.gmra.mxu0 %v890
        %v1053 = vpop.f32.mrf.mxu0
        %v1054 = vadd.f32 0.0, %v1053
        %v1055 = vpop.f32.mrf.mxu0
        %1056 = vmatprep.mubr.f32.mxu0 0.0
        %1057 = vmatmul.mubr.f32.gmra.mxu0 %v893
        %v1058 = vpop.f32.mrf.mxu0
        %v1059 = vadd.f32 0.0, %v1058
        %v1060 = vpop.f32.mrf.mxu0
        %1061 = vmatprep.mubr.f32.mxu0 0.0
        %1062 = vmatmul.mubr.f32.gmra.mxu0 %v896
        %v1063 = vpop.f32.mrf.mxu0
        %v1064 = vadd.f32 0.0, %v1063
        %v1065 = vpop.f32.mrf.mxu0
        %1066 = vmatprep.mubr.f32.mxu0 0.0
        %1067 = vmatmul.mubr.f32.gmra.mxu0 %v899
        %v1068 = vpop.f32.mrf.mxu0
        %v1069 = vadd.f32 0.0, %v1068
        %v1070 = vpop.f32.mrf.mxu0
        %1071 = vmatprep.mubr.f32.mxu0 0.0
        %1072 = vmatmul.mubr.f32.gmra.mxu0 %v902
        %v1073 = vpop.f32.mrf.mxu0
        %v1074 = vadd.f32 0.0, %v1073
        %v1075 = vpop.f32.mrf.mxu0
        %1076 = vmatprep.mubr.f32.mxu0 0.0
        %1077 = vmatmul.mubr.f32.gmra.mxu0 %v905
        %v1078 = vpop.f32.mrf.mxu0
        %v1079 = vadd.f32 0.0, %v1078
        %v1080 = vpop.f32.mrf.mxu0
        %1081 = vmatprep.mubr.f32.mxu0 0.0
        %1082 = vmatmul.mubr.f32.gmra.mxu0 %v908
        %v1083 = vpop.f32.mrf.mxu0
        %v1084 = vadd.f32 0.0, %v1083
        %v1085 = vpop.f32.mrf.mxu0
        %1086 = vmatprep.mubr.f32.mxu0 0.0
        %1087 = vmatmul.mubr.f32.gmra.mxu0 %v911
        %v1088 = vpop.f32.mrf.mxu0
        %v1089 = vadd.f32 0.0, %v1088
        %v1090 = vpop.f32.mrf.mxu0
        %1091 = vmatprep.mubr.f32.mxu0 0.0
        %1092 = vmatmul.mubr.f32.gmra.mxu0 %v914
        %v1093 = vpop.f32.mrf.mxu0
        %v1094 = vadd.f32 0.0, %v1093
        %v1095 = vpop.f32.mrf.mxu0
        %1096 = vmatprep.mubr.f32.mxu0 0.0
        %1097 = vmatmul.mubr.f32.gmra.mxu0 %v917
        %v1098 = vpop.f32.mrf.mxu0
        %v1099 = vadd.f32 0.0, %v1098
        %v1100 = vpop.f32.mrf.mxu0
        %1101 = vmatprep.mubr.f32.mxu0 0.0
        %1102 = vmatmul.mubr.f32.gmra.mxu0 %v920
        %v1103 = vpop.f32.mrf.mxu0
        %v1104 = vadd.f32 0.0, %v1103
        %v1105 = vpop.f32.mrf.mxu0
        %1106 = vmatprep.mubr.f32.mxu0 0.0
        %1107 = vmatmul.mubr.f32.gmra.mxu0 %v923
        %v1108 = vpop.f32.mrf.mxu0
        %v1109 = vadd.f32 0.0, %v1108
        %v1110 = vpop.f32.mrf.mxu0
        %1111 = vmatprep.mubr.f32.mxu0 0.0
        %1112 = vmatmul.mubr.f32.gmra.mxu0 %v926
        %v1113 = vpop.f32.mrf.mxu0
        %v1114 = vadd.f32 0.0, %v1113
        %v1115 = vpop.f32.mrf.mxu0
        %1116 = vmatprep.mubr.f32.mxu0 0.0
        %1117 = vmatmul.mubr.f32.gmra.mxu0 %v929
        %v1118 = vpop.f32.mrf.mxu0
        %v1119 = vadd.f32 0.0, %v1118
        %v1120 = vpop.f32.mrf.mxu0
        %1121 = vmatprep.mubr.f32.mxu0 0.0
        %1122 = vmatmul.mubr.f32.gmra.mxu0 %v932
        %v1123 = vpop.f32.mrf.mxu0
        %v1124 = vadd.f32 0.0, %v1123
        %v1125 = vpop.f32.mrf.mxu0
        %1126 = vmatprep.mubr.f32.mxu0 0.0
        %1127 = vmatmul.mubr.f32.gmra.mxu0 %v935
        %v1128 = vpop.f32.mrf.mxu0
        %v1129 = vadd.f32 0.0, %v1128
        %v1130 = vpop.f32.mrf.mxu0
        %1131 = vmatprep.mubr.f32.mxu0 0.0
        %1132 = vmatmul.mubr.f32.gmra.mxu0 %v938
        %v1133 = vpop.f32.mrf.mxu0
        %v1134 = vadd.f32 0.0, %v1133
        %v1135 = vpop.f32.mrf.mxu0
        %1136 = vmatprep.mubr.f32.mxu0 0.0
        %1137 = vmatmul.mubr.f32.gmra.mxu0 %v941
        %v1138 = vpop.f32.mrf.mxu0
        %v1139 = vadd.f32 0.0, %v1138
        %v1140 = vpop.f32.mrf.mxu0
        %1141 = vmatprep.mubr.f32.mxu0 0.0
        %1142 = vmatmul.mubr.f32.gmra.mxu0 %v944
        %v1143 = vpop.f32.mrf.mxu0
        %v1144 = vadd.f32 0.0, %v1143
        %v1145 = vpop.f32.mrf.mxu0
        %1146 = vmatprep.mubr.f32.mxu0 0.0
        %1147 = vmatmul.mubr.f32.gmra.mxu0 %v947
        %v1148 = vpop.f32.mrf.mxu0
        %v1149 = vadd.f32 0.0, %v1148
        %v1150 = vpop.f32.mrf.mxu0
        %1151 = vmatprep.mubr.f32.mxu0 0.0
        %1152 = vmatmul.mubr.f32.gmra.mxu0 %v950
        %v1153 = vpop.f32.mrf.mxu0
        %v1154 = vadd.f32 0.0, %v1153
        %v1155 = vpop.f32.mrf.mxu0
        %1156 = vmatprep.mubr.f32.mxu0 0.0
        %1157 = vmatmul.mubr.f32.gmra.mxu0 %v953
        %v1158 = vpop.f32.mrf.mxu0
        %v1159 = vadd.f32 0.0, %v1158
        %v1160 = vpop.f32.mrf.mxu0
        %1161 = vmatprep.mubr.f32.mxu0 0.0
        %1162 = vmatmul.mubr.f32.gmra.mxu0 %v956
        %v1163 = vpop.f32.mrf.mxu0
        %v1164 = vadd.f32 0.0, %v1163
        %v1165 = vpop.f32.mrf.mxu0
        %1166 = vmatprep.mubr.f32.mxu0 0.0
        %1167 = vmatmul.mubr.f32.gmra.mxu0 %v959
        %v1168 = vpop.f32.mrf.mxu0
        %v1169 = vadd.f32 0.0, %v1168
        %v1170 = vpop.f32.mrf.mxu0
        %1171 = vmatprep.mubr.f32.mxu0 0.0
        %1172 = vmatmul.mubr.f32.gmra.mxu0 %v962
        %v1173 = vpop.f32.mrf.mxu0
        %v1174 = vadd.f32 0.0, %v1173
        %v1175 = vpop.f32.mrf.mxu0
        %1176 = vmatprep.mubr.f32.mxu0 0.0
        %1177 = vmatmul.mubr.f32.gmra.mxu0 %v965
        %v1178 = vpop.f32.mrf.mxu0
        %v1179 = vadd.f32 0.0, %v1178
        %v1180 = vpop.f32.mrf.mxu0
        %1181 = vmatprep.mubr.f32.mxu0 0.0
        %1182 = vmatmul.mubr.f32.gmra.mxu0 %v968
        %v1183 = vpop.f32.mrf.mxu0
        %v1184 = vadd.f32 0.0, %v1183
        %v1185 = vpop.f32.mrf.mxu0
        %1186 = vmatprep.mubr.f32.mxu0 0.0
        %1187 = vmatmul.mubr.f32.gmra.mxu0 %v971
        %v1188 = vpop.f32.mrf.mxu0
        %v1189 = vadd.f32 0.0, %v1188
        %v1190 = vpop.f32.mrf.mxu0
        %1191 = vmatprep.mubr.f32.mxu0 0.0
        %1192 = vmatmul.mubr.f32.gmra.mxu0 %v974
        %v1193 = vpop.f32.mrf.mxu0
        %v1194 = vadd.f32 0.0, %v1193
        %v1195 = vpop.f32.mrf.mxu0
        %1196 = vmatprep.mubr.f32.mxu0 0.0
        %1197 = vmatmul.mubr.f32.gmra.mxu0 %v977
        %v1198 = vpop.f32.mrf.mxu0
        %v1199 = vadd.f32 0.0, %v1198
        %v1200 = vpop.f32.mrf.mxu0
        %1201 = vmatprep.mubr.f32.mxu0 0.0
        %1202 = vmatmul.mubr.f32.gmra.mxu0 %v980
        %v1203 = vpop.f32.mrf.mxu0
        %v1204 = vadd.f32 0.0, %v1203
        %v1205 = vpop.f32.mrf.mxu0
        %1206 = vdwg.mxu0
        %v1207 = vadd.f32 %v845, %v1049
        %v1208 = vadd.f32 %v846, %v1054
        %v1209 = vadd.f32 %v847, %v1059
        %v1210 = vadd.f32 %v848, %v1064
        %v1211 = vadd.f32 %v849, %v1069
        %v1212 = vadd.f32 %v850, %v1074
        %v1213 = vadd.f32 %v851, %v1079
        %v1214 = vadd.f32 %v852, %v1084
        %v1215 = vadd.f32 %v853, %v1089
        %v1216 = vadd.f32 %v854, %v1094
        %v1217 = vadd.f32 %v855, %v1099
        %v1218 = vadd.f32 %v856, %v1104
        %v1219 = vadd.f32 %v857, %v1109
        %v1220 = vadd.f32 %v858, %v1114
        %v1221 = vadd.f32 %v859, %v1119
        %v1222 = vadd.f32 %v860, %v1124
        %v1223 = vadd.f32 %v861, %v1129
        %v1224 = vadd.f32 %v862, %v1134
        %v1225 = vadd.f32 %v863, %v1139
        %v1226 = vadd.f32 %v864, %v1144
        %v1227 = vadd.f32 %v865, %v1149
        %v1228 = vadd.f32 %v866, %v1154
        %v1229 = vadd.f32 %v867, %v1159
        %v1230 = vadd.f32 %v868, %v1164
        %v1231 = vadd.f32 %v869, %v1169
        %v1232 = vadd.f32 %v870, %v1174
        %v1233 = vadd.f32 %v871, %v1179
        %v1234 = vadd.f32 %v872, %v1184
        %v1235 = vadd.f32 %v873, %v1189
        %v1236 = vadd.f32 %v874, %v1194
        %v1237 = vadd.f32 %v875, %v1199
        %v1238 = vadd.f32 %v876, %v1204
        %1239 = vst [vmem:[#allocation2] sm:$0xff] %v1207
        %1240 = vst [vmem:[#allocation2 + $0x8] sm:$0xff] %v1208
        %1241 = vst [vmem:[#allocation2 + $0x10] sm:$0xff] %v1209
        %1242 = vst [vmem:[#allocation2 + $0x18] sm:$0xff] %v1210
        %1243 = vst [vmem:[#allocation2 + $0x20] sm:$0xff] %v1211
        %1244 = vst [vmem:[#allocation2 + $0x28] sm:$0xff] %v1212
        %1245 = vst [vmem:[#allocation2 + $0x30] sm:$0xff] %v1213
        %1246 = vst [vmem:[#allocation2 + $0x38] sm:$0xff] %v1214
        %1247 = vst [vmem:[#allocation2 + $0x40] sm:$0xff] %v1215
        %1248 = vst [vmem:[#allocation2 + $0x48] sm:$0xff] %v1216
        %1249 = vst [vmem:[#allocation2 + $0x50] sm:$0xff] %v1217
        %1250 = vst [vmem:[#allocation2 + $0x58] sm:$0xff] %v1218
        %1251 = vst [vmem:[#allocation2 + $0x60] sm:$0xff] %v1219
        %1252 = vst [vmem:[#allocation2 + $0x68] sm:$0xff] %v1220
        %1253 = vst [vmem:[#allocation2 + $0x70] sm:$0xff] %v1221
        %1254 = vst [vmem:[#allocation2 + $0x78] sm:$0xff] %v1222
        %1255 = vst [vmem:[#allocation2 + $0x80] sm:$0xff] %v1223
        %1256 = vst [vmem:[#allocation2 + $0x88] sm:$0xff] %v1224
        %1257 = vst [vmem:[#allocation2 + $0x90] sm:$0xff] %v1225
        %1258 = vst [vmem:[#allocation2 + $0x98] sm:$0xff] %v1226
        %1259 = vst [vmem:[#allocation2 + $0xa0] sm:$0xff] %v1227
        %1260 = vst [vmem:[#allocation2 + $0xa8] sm:$0xff] %v1228
        %1261 = vst [vmem:[#allocation2 + $0xb0] sm:$0xff] %v1229
        %1262 = vst [vmem:[#allocation2 + $0xb8] sm:$0xff] %v1230
        %1263 = vst [vmem:[#allocation2 + $0xc0] sm:$0xff] %v1231
        %1264 = vst [vmem:[#allocation2 + $0xc8] sm:$0xff] %v1232
        %1265 = vst [vmem:[#allocation2 + $0xd0] sm:$0xff] %v1233
        %1266 = vst [vmem:[#allocation2 + $0xd8] sm:$0xff] %v1234
        %1267 = vst [vmem:[#allocation2 + $0xe0] sm:$0xff] %v1235
        %1268 = vst [vmem:[#allocation2 + $0xe8] sm:$0xff] %v1236
        %1269 = vst [vmem:[#allocation2 + $0xf0] sm:$0xff] %v1237
        %1270 = vst [vmem:[#allocation2 + $0xf8] sm:$0xff] %v1238
        %v1271 = vld [vmem:[#allocation3 + $0x4] sm:$0xff]
        %v1272 = vld [vmem:[#allocation3 + $0xc] sm:$0xff]
        %v1273 = vld [vmem:[#allocation3 + $0x14] sm:$0xff]
        %v1274 = vld [vmem:[#allocation3 + $0x1c] sm:$0xff]
        %v1275 = vld [vmem:[#allocation3 + $0x24] sm:$0xff]
        %v1276 = vld [vmem:[#allocation3 + $0x2c] sm:$0xff]
        %v1277 = vld [vmem:[#allocation3 + $0x34] sm:$0xff]
        %v1278 = vld [vmem:[#allocation3 + $0x3c] sm:$0xff]
        %v1279 = vld [vmem:[#allocation3 + $0x44] sm:$0xff]
        %v1280 = vld [vmem:[#allocation3 + $0x4c] sm:$0xff]
        %v1281 = vld [vmem:[#allocation3 + $0x54] sm:$0xff]
        %v1282 = vld [vmem:[#allocation3 + $0x5c] sm:$0xff]
        %v1283 = vld [vmem:[#allocation3 + $0x64] sm:$0xff]
        %v1284 = vld [vmem:[#allocation3 + $0x6c] sm:$0xff]
        %v1285 = vld [vmem:[#allocation3 + $0x74] sm:$0xff]
        %v1286 = vld [vmem:[#allocation3 + $0x7c] sm:$0xff]
        %v1287 = vld [vmem:[#allocation3 + $0x84] sm:$0xff]
        %v1288 = vld [vmem:[#allocation3 + $0x8c] sm:$0xff]
        %v1289 = vld [vmem:[#allocation3 + $0x94] sm:$0xff]
        %v1290 = vld [vmem:[#allocation3 + $0x9c] sm:$0xff]
        %v1291 = vld [vmem:[#allocation3 + $0xa4] sm:$0xff]
        %v1292 = vld [vmem:[#allocation3 + $0xac] sm:$0xff]
        %v1293 = vld [vmem:[#allocation3 + $0xb4] sm:$0xff]
        %v1294 = vld [vmem:[#allocation3 + $0xbc] sm:$0xff]
        %v1295 = vld [vmem:[#allocation3 + $0xc4] sm:$0xff]
        %v1296 = vld [vmem:[#allocation3 + $0xcc] sm:$0xff]
        %v1297 = vld [vmem:[#allocation3 + $0xd4] sm:$0xff]
        %v1298 = vld [vmem:[#allocation3 + $0xdc] sm:$0xff]
        %v1299 = vld [vmem:[#allocation3 + $0xe4] sm:$0xff]
        %v1300 = vld [vmem:[#allocation3 + $0xec] sm:$0xff]
        %v1301 = vld [vmem:[#allocation3 + $0xf4] sm:$0xff]
        %v1302 = vld [vmem:[#allocation3 + $0xfc] sm:$0xff]
        %v1303 = vld [vmem:[#allocation2] sm:$0xff]
        %v1304 = vld [vmem:[#allocation2 + $0x8] sm:$0xff]
        %v1305 = vld [vmem:[#allocation2 + $0x10] sm:$0xff]
        %v1306 = vld [vmem:[#allocation2 + $0x18] sm:$0xff]
        %v1307 = vld [vmem:[#allocation2 + $0x20] sm:$0xff]
        %v1308 = vld [vmem:[#allocation2 + $0x28] sm:$0xff]
        %v1309 = vld [vmem:[#allocation2 + $0x30] sm:$0xff]
        %v1310 = vld [vmem:[#allocation2 + $0x38] sm:$0xff]
        %v1311 = vld [vmem:[#allocation2 + $0x40] sm:$0xff]
        %v1312 = vld [vmem:[#allocation2 + $0x48] sm:$0xff]
        %v1313 = vld [vmem:[#allocation2 + $0x50] sm:$0xff]
        %v1314 = vld [vmem:[#allocation2 + $0x58] sm:$0xff]
        %v1315 = vld [vmem:[#allocation2 + $0x60] sm:$0xff]
        %v1316 = vld [vmem:[#allocation2 + $0x68] sm:$0xff]
        %v1317 = vld [vmem:[#allocation2 + $0x70] sm:$0xff]
        %v1318 = vld [vmem:[#allocation2 + $0x78] sm:$0xff]
        %v1319 = vld [vmem:[#allocation2 + $0x80] sm:$0xff]
        %v1320 = vld [vmem:[#allocation2 + $0x88] sm:$0xff]
        %v1321 = vld [vmem:[#allocation2 + $0x90] sm:$0xff]
        %v1322 = vld [vmem:[#allocation2 + $0x98] sm:$0xff]
        %v1323 = vld [vmem:[#allocation2 + $0xa0] sm:$0xff]
        %v1324 = vld [vmem:[#allocation2 + $0xa8] sm:$0xff]
        %v1325 = vld [vmem:[#allocation2 + $0xb0] sm:$0xff]
        %v1326 = vld [vmem:[#allocation2 + $0xb8] sm:$0xff]
        %v1327 = vld [vmem:[#allocation2 + $0xc0] sm:$0xff]
        %v1328 = vld [vmem:[#allocation2 + $0xc8] sm:$0xff]
        %v1329 = vld [vmem:[#allocation2 + $0xd0] sm:$0xff]
        %v1330 = vld [vmem:[#allocation2 + $0xd8] sm:$0xff]
        %v1331 = vld [vmem:[#allocation2 + $0xe0] sm:$0xff]
        %v1332 = vld [vmem:[#allocation2 + $0xe8] sm:$0xff]
        %v1333 = vld [vmem:[#allocation2 + $0xf0] sm:$0xff]
        %v1334 = vld [vmem:[#allocation2 + $0xf8] sm:$0xff]
        %s1335 = scalar_lea.vmem %s2, 128
        %v1336 = vld [vmem:[%s1335] sm:$0xff]
        %v1337 = vld [vmem:[%s1335 + $0x8] sm:$0xff]
        %v1338 = vld [vmem:[%s1335 + $0x10] sm:$0xff]
        %v1339 = vld [vmem:[%s1335 + $0x18] sm:$0xff]
        %v1340 = vld [vmem:[%s1335 + $0x20] sm:$0xff]
        %v1341 = vld [vmem:[%s1335 + $0x28] sm:$0xff]
        %v1342 = vld [vmem:[%s1335 + $0x30] sm:$0xff]
        %v1343 = vld [vmem:[%s1335 + $0x38] sm:$0xff]
        %v1345 = vsel %vm282, %v1271, 0
        %v1348 = vsel %vm282, %v1272, 0
        %v1351 = vsel %vm282, %v1273, 0
        %v1354 = vsel %vm282, %v1274, 0
        %v1357 = vsel %vm282, %v1275, 0
        %v1360 = vsel %vm282, %v1276, 0
        %v1363 = vsel %vm282, %v1277, 0
        %v1366 = vsel %vm282, %v1278, 0
        %v1369 = vsel %vm282, %v1279, 0
        %v1372 = vsel %vm282, %v1280, 0
        %v1375 = vsel %vm282, %v1281, 0
        %v1378 = vsel %vm282, %v1282, 0
        %v1381 = vsel %vm282, %v1283, 0
        %v1384 = vsel %vm282, %v1284, 0
        %v1387 = vsel %vm282, %v1285, 0
        %v1390 = vsel %vm282, %v1286, 0
        %v1393 = vsel %vm282, %v1287, 0
        %v1396 = vsel %vm282, %v1288, 0
        %v1399 = vsel %vm282, %v1289, 0
        %v1402 = vsel %vm282, %v1290, 0
        %v1405 = vsel %vm282, %v1291, 0
        %v1408 = vsel %vm282, %v1292, 0
        %v1411 = vsel %vm282, %v1293, 0
        %v1414 = vsel %vm282, %v1294, 0
        %v1417 = vsel %vm282, %v1295, 0
        %v1420 = vsel %vm282, %v1296, 0
        %v1423 = vsel %vm282, %v1297, 0
        %v1426 = vsel %vm282, %v1298, 0
        %v1429 = vsel %vm282, %v1299, 0
        %v1432 = vsel %vm282, %v1300, 0
        %v1435 = vsel %vm282, %v1301, 0
        %v1438 = vsel %vm282, %v1302, 0
        %1440 = vmatprep.subr.mxu0 0.0
        %1441 = vmatpush1.msra.mxu0 0.0
        %1442 = vmatprep.subr.mxu0 0.0
        %1443 = vmatpush1.msra.mxu0 0.0
        %1444 = vmatprep.subr.mxu0 0.0
        %1445 = vmatpush1.msra.mxu0 0.0
        %1446 = vmatprep.subr.mxu0 0.0
        %1447 = vmatpush1.msra.mxu0 0.0
        %1448 = vmatprep.subr.mxu0 0.0
        %1449 = vmatpush1.msra.mxu0 0.0
        %1450 = vmatprep.subr.mxu0 0.0
        %1451 = vmatpush1.msra.mxu0 0.0
        %1452 = vmatprep.subr.mxu0 0.0
        %1453 = vmatpush1.msra.mxu0 0.0
        %1454 = vmatprep.subr.mxu0 0.0
        %1455 = vmatpush1.msra.mxu0 0.0
        %1456 = vmatprep.subr.mxu0 0.0
        %1457 = vmatpush1.msra.mxu0 %v1343
        %1458 = vmatprep.subr.mxu0 0.0
        %1459 = vmatpush1.msra.mxu0 %v1342
        %1460 = vmatprep.subr.mxu0 0.0
        %1461 = vmatpush1.msra.mxu0 %v1341
        %1462 = vmatprep.subr.mxu0 0.0
        %1463 = vmatpush1.msra.mxu0 %v1340
        %1464 = vmatprep.subr.mxu0 0.0
        %1465 = vmatpush1.msra.mxu0 %v1339
        %1466 = vmatprep.subr.mxu0 0.0
        %1467 = vmatpush1.msra.mxu0 %v1338
        %1468 = vmatprep.subr.mxu0 0.0
        %1469 = vmatpush1.msra.mxu0 %v1337
        %1470 = vmatprep.subr.mxu0 0.0
        %1471 = vmatpush1.msra.mxu0 %v1336
        %1472 = vmatprep.subr.mxu0 0.0
        %1473 = vmatpush2.msra.mxu0 0.0
        %1474 = vmatprep.subr.mxu0 0.0
        %1475 = vmatpush2.msra.mxu0 0.0
        %1476 = vmatprep.subr.mxu0 0.0
        %1477 = vmatpush2.msra.mxu0 0.0
        %1478 = vmatprep.subr.mxu0 0.0
        %1479 = vmatpush2.msra.mxu0 0.0
        %1480 = vmatprep.subr.mxu0 0.0
        %1481 = vmatpush2.msra.mxu0 0.0
        %1482 = vmatprep.subr.mxu0 0.0
        %1483 = vmatpush2.msra.mxu0 0.0
        %1484 = vmatprep.subr.mxu0 0.0
        %1485 = vmatpush2.msra.mxu0 0.0
        %1486 = vmatprep.subr.mxu0 0.0
        %1487 = vmatpush2.msra.mxu0 0.0
        %1488 = vmatprep.subr.mxu0 0.0
        %1489 = vmatpush2.msra.mxu0 0.0
        %1490 = vmatprep.subr.mxu0 0.0
        %1491 = vmatpush2.msra.mxu0 0.0
        %1492 = vmatprep.subr.mxu0 0.0
        %1493 = vmatpush2.msra.mxu0 0.0
        %1494 = vmatprep.subr.mxu0 0.0
        %1495 = vmatpush2.msra.mxu0 0.0
        %1496 = vmatprep.subr.mxu0 0.0
        %1497 = vmatpush2.msra.mxu0 0.0
        %1498 = vmatprep.subr.mxu0 0.0
        %1499 = vmatpush2.msra.mxu0 0.0
        %1500 = vmatprep.subr.mxu0 0.0
        %1501 = vmatpush2.msra.mxu0 0.0
        %1502 = vmatprep.subr.mxu0 0.0
        %1503 = vmatpush2.msra.mxu0 0.0
        %1504 = vmatprep.mubr.f32.mxu0 0.0
        %1505 = vmatmul.mubr.f32.gmra.mxu0 %v1345
        %v1506 = vpop.f32.mrf.mxu0
        %v1507 = vadd.f32 0.0, %v1506
        %v1508 = vpop.f32.mrf.mxu0
        %1509 = vmatprep.mubr.f32.mxu0 0.0
        %1510 = vmatmul.mubr.f32.gmra.mxu0 %v1348
        %v1511 = vpop.f32.mrf.mxu0
        %v1512 = vadd.f32 0.0, %v1511
        %v1513 = vpop.f32.mrf.mxu0
        %1514 = vmatprep.mubr.f32.mxu0 0.0
        %1515 = vmatmul.mubr.f32.gmra.mxu0 %v1351
        %v1516 = vpop.f32.mrf.mxu0
        %v1517 = vadd.f32 0.0, %v1516
        %v1518 = vpop.f32.mrf.mxu0
        %1519 = vmatprep.mubr.f32.mxu0 0.0
        %1520 = vmatmul.mubr.f32.gmra.mxu0 %v1354
        %v1521 = vpop.f32.mrf.mxu0
        %v1522 = vadd.f32 0.0, %v1521
        %v1523 = vpop.f32.mrf.mxu0
        %1524 = vmatprep.mubr.f32.mxu0 0.0
        %1525 = vmatmul.mubr.f32.gmra.mxu0 %v1357
        %v1526 = vpop.f32.mrf.mxu0
        %v1527 = vadd.f32 0.0, %v1526
        %v1528 = vpop.f32.mrf.mxu0
        %1529 = vmatprep.mubr.f32.mxu0 0.0
        %1530 = vmatmul.mubr.f32.gmra.mxu0 %v1360
        %v1531 = vpop.f32.mrf.mxu0
        %v1532 = vadd.f32 0.0, %v1531
        %v1533 = vpop.f32.mrf.mxu0
        %1534 = vmatprep.mubr.f32.mxu0 0.0
        %1535 = vmatmul.mubr.f32.gmra.mxu0 %v1363
        %v1536 = vpop.f32.mrf.mxu0
        %v1537 = vadd.f32 0.0, %v1536
        %v1538 = vpop.f32.mrf.mxu0
        %1539 = vmatprep.mubr.f32.mxu0 0.0
        %1540 = vmatmul.mubr.f32.gmra.mxu0 %v1366
        %v1541 = vpop.f32.mrf.mxu0
        %v1542 = vadd.f32 0.0, %v1541
        %v1543 = vpop.f32.mrf.mxu0
        %1544 = vmatprep.mubr.f32.mxu0 0.0
        %1545 = vmatmul.mubr.f32.gmra.mxu0 %v1369
        %v1546 = vpop.f32.mrf.mxu0
        %v1547 = vadd.f32 0.0, %v1546
        %v1548 = vpop.f32.mrf.mxu0
        %1549 = vmatprep.mubr.f32.mxu0 0.0
        %1550 = vmatmul.mubr.f32.gmra.mxu0 %v1372
        %v1551 = vpop.f32.mrf.mxu0
        %v1552 = vadd.f32 0.0, %v1551
        %v1553 = vpop.f32.mrf.mxu0
        %1554 = vmatprep.mubr.f32.mxu0 0.0
        %1555 = vmatmul.mubr.f32.gmra.mxu0 %v1375
        %v1556 = vpop.f32.mrf.mxu0
        %v1557 = vadd.f32 0.0, %v1556
        %v1558 = vpop.f32.mrf.mxu0
        %1559 = vmatprep.mubr.f32.mxu0 0.0
        %1560 = vmatmul.mubr.f32.gmra.mxu0 %v1378
        %v1561 = vpop.f32.mrf.mxu0
        %v1562 = vadd.f32 0.0, %v1561
        %v1563 = vpop.f32.mrf.mxu0
        %1564 = vmatprep.mubr.f32.mxu0 0.0
        %1565 = vmatmul.mubr.f32.gmra.mxu0 %v1381
        %v1566 = vpop.f32.mrf.mxu0
        %v1567 = vadd.f32 0.0, %v1566
        %v1568 = vpop.f32.mrf.mxu0
        %1569 = vmatprep.mubr.f32.mxu0 0.0
        %1570 = vmatmul.mubr.f32.gmra.mxu0 %v1384
        %v1571 = vpop.f32.mrf.mxu0
        %v1572 = vadd.f32 0.0, %v1571
        %v1573 = vpop.f32.mrf.mxu0
        %1574 = vmatprep.mubr.f32.mxu0 0.0
        %1575 = vmatmul.mubr.f32.gmra.mxu0 %v1387
        %v1576 = vpop.f32.mrf.mxu0
        %v1577 = vadd.f32 0.0, %v1576
        %v1578 = vpop.f32.mrf.mxu0
        %1579 = vmatprep.mubr.f32.mxu0 0.0
        %1580 = vmatmul.mubr.f32.gmra.mxu0 %v1390
        %v1581 = vpop.f32.mrf.mxu0
        %v1582 = vadd.f32 0.0, %v1581
        %v1583 = vpop.f32.mrf.mxu0
        %1584 = vmatprep.mubr.f32.mxu0 0.0
        %1585 = vmatmul.mubr.f32.gmra.mxu0 %v1393
        %v1586 = vpop.f32.mrf.mxu0
        %v1587 = vadd.f32 0.0, %v1586
        %v1588 = vpop.f32.mrf.mxu0
        %1589 = vmatprep.mubr.f32.mxu0 0.0
        %1590 = vmatmul.mubr.f32.gmra.mxu0 %v1396
        %v1591 = vpop.f32.mrf.mxu0
        %v1592 = vadd.f32 0.0, %v1591
        %v1593 = vpop.f32.mrf.mxu0
        %1594 = vmatprep.mubr.f32.mxu0 0.0
        %1595 = vmatmul.mubr.f32.gmra.mxu0 %v1399
        %v1596 = vpop.f32.mrf.mxu0
        %v1597 = vadd.f32 0.0, %v1596
        %v1598 = vpop.f32.mrf.mxu0
        %1599 = vmatprep.mubr.f32.mxu0 0.0
        %1600 = vmatmul.mubr.f32.gmra.mxu0 %v1402
        %v1601 = vpop.f32.mrf.mxu0
        %v1602 = vadd.f32 0.0, %v1601
        %v1603 = vpop.f32.mrf.mxu0
        %1604 = vmatprep.mubr.f32.mxu0 0.0
        %1605 = vmatmul.mubr.f32.gmra.mxu0 %v1405
        %v1606 = vpop.f32.mrf.mxu0
        %v1607 = vadd.f32 0.0, %v1606
        %v1608 = vpop.f32.mrf.mxu0
        %1609 = vmatprep.mubr.f32.mxu0 0.0
        %1610 = vmatmul.mubr.f32.gmra.mxu0 %v1408
        %v1611 = vpop.f32.mrf.mxu0
        %v1612 = vadd.f32 0.0, %v1611
        %v1613 = vpop.f32.mrf.mxu0
        %1614 = vmatprep.mubr.f32.mxu0 0.0
        %1615 = vmatmul.mubr.f32.gmra.mxu0 %v1411
        %v1616 = vpop.f32.mrf.mxu0
        %v1617 = vadd.f32 0.0, %v1616
        %v1618 = vpop.f32.mrf.mxu0
        %1619 = vmatprep.mubr.f32.mxu0 0.0
        %1620 = vmatmul.mubr.f32.gmra.mxu0 %v1414
        %v1621 = vpop.f32.mrf.mxu0
        %v1622 = vadd.f32 0.0, %v1621
        %v1623 = vpop.f32.mrf.mxu0
        %1624 = vmatprep.mubr.f32.mxu0 0.0
        %1625 = vmatmul.mubr.f32.gmra.mxu0 %v1417
        %v1626 = vpop.f32.mrf.mxu0
        %v1627 = vadd.f32 0.0, %v1626
        %v1628 = vpop.f32.mrf.mxu0
        %1629 = vmatprep.mubr.f32.mxu0 0.0
        %1630 = vmatmul.mubr.f32.gmra.mxu0 %v1420
        %v1631 = vpop.f32.mrf.mxu0
        %v1632 = vadd.f32 0.0, %v1631
        %v1633 = vpop.f32.mrf.mxu0
        %1634 = vmatprep.mubr.f32.mxu0 0.0
        %1635 = vmatmul.mubr.f32.gmra.mxu0 %v1423
        %v1636 = vpop.f32.mrf.mxu0
        %v1637 = vadd.f32 0.0, %v1636
        %v1638 = vpop.f32.mrf.mxu0
        %1639 = vmatprep.mubr.f32.mxu0 0.0
        %1640 = vmatmul.mubr.f32.gmra.mxu0 %v1426
        %v1641 = vpop.f32.mrf.mxu0
        %v1642 = vadd.f32 0.0, %v1641
        %v1643 = vpop.f32.mrf.mxu0
        %1644 = vmatprep.mubr.f32.mxu0 0.0
        %1645 = vmatmul.mubr.f32.gmra.mxu0 %v1429
        %v1646 = vpop.f32.mrf.mxu0
        %v1647 = vadd.f32 0.0, %v1646
        %v1648 = vpop.f32.mrf.mxu0
        %1649 = vmatprep.mubr.f32.mxu0 0.0
        %1650 = vmatmul.mubr.f32.gmra.mxu0 %v1432
        %v1651 = vpop.f32.mrf.mxu0
        %v1652 = vadd.f32 0.0, %v1651
        %v1653 = vpop.f32.mrf.mxu0
        %1654 = vmatprep.mubr.f32.mxu0 0.0
        %1655 = vmatmul.mubr.f32.gmra.mxu0 %v1435
        %v1656 = vpop.f32.mrf.mxu0
        %v1657 = vadd.f32 0.0, %v1656
        %v1658 = vpop.f32.mrf.mxu0
        %1659 = vmatprep.mubr.f32.mxu0 0.0
        %1660 = vmatmul.mubr.f32.gmra.mxu0 %v1438
        %v1661 = vpop.f32.mrf.mxu0
        %v1662 = vadd.f32 0.0, %v1661
        %v1663 = vpop.f32.mrf.mxu0
        %1664 = vdwg.mxu0
        %v1665 = vadd.f32 %v1303, %v1507
        %v1666 = vadd.f32 %v1304, %v1512
        %v1667 = vadd.f32 %v1305, %v1517
        %v1668 = vadd.f32 %v1306, %v1522
        %v1669 = vadd.f32 %v1307, %v1527
        %v1670 = vadd.f32 %v1308, %v1532
        %v1671 = vadd.f32 %v1309, %v1537
        %v1672 = vadd.f32 %v1310, %v1542
        %v1673 = vadd.f32 %v1311, %v1547
        %v1674 = vadd.f32 %v1312, %v1552
        %v1675 = vadd.f32 %v1313, %v1557
        %v1676 = vadd.f32 %v1314, %v1562
        %v1677 = vadd.f32 %v1315, %v1567
        %v1678 = vadd.f32 %v1316, %v1572
        %v1679 = vadd.f32 %v1317, %v1577
        %v1680 = vadd.f32 %v1318, %v1582
        %v1681 = vadd.f32 %v1319, %v1587
        %v1682 = vadd.f32 %v1320, %v1592
        %v1683 = vadd.f32 %v1321, %v1597
        %v1684 = vadd.f32 %v1322, %v1602
        %v1685 = vadd.f32 %v1323, %v1607
        %v1686 = vadd.f32 %v1324, %v1612
        %v1687 = vadd.f32 %v1325, %v1617
        %v1688 = vadd.f32 %v1326, %v1622
        %v1689 = vadd.f32 %v1327, %v1627
        %v1690 = vadd.f32 %v1328, %v1632
        %v1691 = vadd.f32 %v1329, %v1637
        %v1692 = vadd.f32 %v1330, %v1642
        %v1693 = vadd.f32 %v1331, %v1647
        %v1694 = vadd.f32 %v1332, %v1652
        %v1695 = vadd.f32 %v1333, %v1657
        %v1696 = vadd.f32 %v1334, %v1662
        %1697 = vst [vmem:[#allocation2] sm:$0xff] %v1665
        %1698 = vst [vmem:[#allocation2 + $0x8] sm:$0xff] %v1666
        %1699 = vst [vmem:[#allocation2 + $0x10] sm:$0xff] %v1667
        %1700 = vst [vmem:[#allocation2 + $0x18] sm:$0xff] %v1668
        %1701 = vst [vmem:[#allocation2 + $0x20] sm:$0xff] %v1669
        %1702 = vst [vmem:[#allocation2 + $0x28] sm:$0xff] %v1670
        %1703 = vst [vmem:[#allocation2 + $0x30] sm:$0xff] %v1671
        %1704 = vst [vmem:[#allocation2 + $0x38] sm:$0xff] %v1672
        %1705 = vst [vmem:[#allocation2 + $0x40] sm:$0xff] %v1673
        %1706 = vst [vmem:[#allocation2 + $0x48] sm:$0xff] %v1674
        %1707 = vst [vmem:[#allocation2 + $0x50] sm:$0xff] %v1675
        %1708 = vst [vmem:[#allocation2 + $0x58] sm:$0xff] %v1676
        %1709 = vst [vmem:[#allocation2 + $0x60] sm:$0xff] %v1677
        %1710 = vst [vmem:[#allocation2 + $0x68] sm:$0xff] %v1678
        %1711 = vst [vmem:[#allocation2 + $0x70] sm:$0xff] %v1679
        %1712 = vst [vmem:[#allocation2 + $0x78] sm:$0xff] %v1680
        %1713 = vst [vmem:[#allocation2 + $0x80] sm:$0xff] %v1681
        %1714 = vst [vmem:[#allocation2 + $0x88] sm:$0xff] %v1682
        %1715 = vst [vmem:[#allocation2 + $0x90] sm:$0xff] %v1683
        %1716 = vst [vmem:[#allocation2 + $0x98] sm:$0xff] %v1684
        %1717 = vst [vmem:[#allocation2 + $0xa0] sm:$0xff] %v1685
        %1718 = vst [vmem:[#allocation2 + $0xa8] sm:$0xff] %v1686
        %1719 = vst [vmem:[#allocation2 + $0xb0] sm:$0xff] %v1687
        %1720 = vst [vmem:[#allocation2 + $0xb8] sm:$0xff] %v1688
        %1721 = vst [vmem:[#allocation2 + $0xc0] sm:$0xff] %v1689
        %1722 = vst [vmem:[#allocation2 + $0xc8] sm:$0xff] %v1690
        %1723 = vst [vmem:[#allocation2 + $0xd0] sm:$0xff] %v1691
        %1724 = vst [vmem:[#allocation2 + $0xd8] sm:$0xff] %v1692
        %1725 = vst [vmem:[#allocation2 + $0xe0] sm:$0xff] %v1693
        %1726 = vst [vmem:[#allocation2 + $0xe8] sm:$0xff] %v1694
        %1727 = vst [vmem:[#allocation2 + $0xf0] sm:$0xff] %v1695
        %1728 = vst [vmem:[#allocation2 + $0xf8] sm:$0xff] %v1696
        %v1729 = vld [vmem:[#allocation2] sm:$0xff]
        %v1730 = vld [vmem:[#allocation2 + $0x8] sm:$0xff]
        %v1731 = vld [vmem:[#allocation2 + $0x10] sm:$0xff]
        %v1732 = vld [vmem:[#allocation2 + $0x18] sm:$0xff]
        %v1733 = vld [vmem:[#allocation2 + $0x20] sm:$0xff]
        %v1734 = vld [vmem:[#allocation2 + $0x28] sm:$0xff]
        %v1735 = vld [vmem:[#allocation2 + $0x30] sm:$0xff]
        %v1736 = vld [vmem:[#allocation2 + $0x38] sm:$0xff]
        %v1737 = vld [vmem:[#allocation2 + $0x40] sm:$0xff]
        %v1738 = vld [vmem:[#allocation2 + $0x48] sm:$0xff]
        %v1739 = vld [vmem:[#allocation2 + $0x50] sm:$0xff]
        %v1740 = vld [vmem:[#allocation2 + $0x58] sm:$0xff]
        %v1741 = vld [vmem:[#allocation2 + $0x60] sm:$0xff]
        %v1742 = vld [vmem:[#allocation2 + $0x68] sm:$0xff]
        %v1743 = vld [vmem:[#allocation2 + $0x70] sm:$0xff]
        %v1744 = vld [vmem:[#allocation2 + $0x78] sm:$0xff]
        %v1745 = vld [vmem:[#allocation2 + $0x80] sm:$0xff]
        %v1746 = vld [vmem:[#allocation2 + $0x88] sm:$0xff]
        %v1747 = vld [vmem:[#allocation2 + $0x90] sm:$0xff]
        %v1748 = vld [vmem:[#allocation2 + $0x98] sm:$0xff]
        %v1749 = vld [vmem:[#allocation2 + $0xa0] sm:$0xff]
        %v1750 = vld [vmem:[#allocation2 + $0xa8] sm:$0xff]
        %v1751 = vld [vmem:[#allocation2 + $0xb0] sm:$0xff]
        %v1752 = vld [vmem:[#allocation2 + $0xb8] sm:$0xff]
        %v1753 = vld [vmem:[#allocation2 + $0xc0] sm:$0xff]
        %v1754 = vld [vmem:[#allocation2 + $0xc8] sm:$0xff]
        %v1755 = vld [vmem:[#allocation2 + $0xd0] sm:$0xff]
        %v1756 = vld [vmem:[#allocation2 + $0xd8] sm:$0xff]
        %v1757 = vld [vmem:[#allocation2 + $0xe0] sm:$0xff]
        %v1758 = vld [vmem:[#allocation2 + $0xe8] sm:$0xff]
        %v1759 = vld [vmem:[#allocation2 + $0xf0] sm:$0xff]
        %v1760 = vld [vmem:[#allocation2 + $0xf8] sm:$0xff]
        %1761 = vst [vmem:[%s226] sm:$0xff] %v1729
        %1762 = vst [vmem:[%s226 + $0x8] sm:$0xff] %v1730
        %1763 = vst [vmem:[%s226 + $0x10] sm:$0xff] %v1731
        %1764 = vst [vmem:[%s226 + $0x18] sm:$0xff] %v1732
        %1765 = vst [vmem:[%s226 + $0x20] sm:$0xff] %v1733
        %1766 = vst [vmem:[%s226 + $0x28] sm:$0xff] %v1734
        %1767 = vst [vmem:[%s226 + $0x30] sm:$0xff] %v1735
        %1768 = vst [vmem:[%s226 + $0x38] sm:$0xff] %v1736
        %1769 = vst [vmem:[%s226 + $0x40] sm:$0xff] %v1737
        %1770 = vst [vmem:[%s226 + $0x48] sm:$0xff] %v1738
        %1771 = vst [vmem:[%s226 + $0x50] sm:$0xff] %v1739
        %1772 = vst [vmem:[%s226 + $0x58] sm:$0xff] %v1740
        %1773 = vst [vmem:[%s226 + $0x60] sm:$0xff] %v1741
        %1774 = vst [vmem:[%s226 + $0x68] sm:$0xff] %v1742
        %1775 = vst [vmem:[%s226 + $0x70] sm:$0xff] %v1743
        %1776 = vst [vmem:[%s226 + $0x78] sm:$0xff] %v1744
        %1777 = vst [vmem:[%s226 + $0x80] sm:$0xff] %v1745
        %1778 = vst [vmem:[%s226 + $0x88] sm:$0xff] %v1746
        %1779 = vst [vmem:[%s226 + $0x90] sm:$0xff] %v1747
        %1780 = vst [vmem:[%s226 + $0x98] sm:$0xff] %v1748
        %1781 = vst [vmem:[%s226 + $0xa0] sm:$0xff] %v1749
        %1782 = vst [vmem:[%s226 + $0xa8] sm:$0xff] %v1750
        %1783 = vst [vmem:[%s226 + $0xb0] sm:$0xff] %v1751
        %1784 = vst [vmem:[%s226 + $0xb8] sm:$0xff] %v1752
        %1785 = vst [vmem:[%s226 + $0xc0] sm:$0xff] %v1753
        %1786 = vst [vmem:[%s226 + $0xc8] sm:$0xff] %v1754
        %1787 = vst [vmem:[%s226 + $0xd0] sm:$0xff] %v1755
        %1788 = vst [vmem:[%s226 + $0xd8] sm:$0xff] %v1756
        %1789 = vst [vmem:[%s226 + $0xe0] sm:$0xff] %v1757
        %1790 = vst [vmem:[%s226 + $0xe8] sm:$0xff] %v1758
        %1791 = vst [vmem:[%s226 + $0xf0] sm:$0xff] %v1759
        %1792 = vst [vmem:[%s226 + $0xf8] sm:$0xff] %v1760
        %s1793 = sand.u32 %s124, 1
        %s1794 = scalar_lea.sflag [#allocation5], %s1793
        %s1795 = sand.u32 %s124, 1
        %s1796 = smul.addr %s1795, 256
        %s1797 = scalar_lea.vmem [#allocation4], %s1796
        // Predicated region
        $region37: #{tpu_custom_call.1} parent=35 // pred_check
          %p1798 = pneg %p134
        $region38: #{tpu_custom_call.1} parent=35 // pred_check_branch
          %1800 = sbr.rel (%p1798) target = $region40
        $region39: #{tpu_custom_call.1} parent=35 // pred_region
          %s1801 = smul.u32 32, %s18
          %s1803 = ssub.s32 4096, 4096
          %1804 = vsyncadd %s1794, %s1803
          %s1805 = smul.addr %s1801, 128
          %s1806 = scalar_lea.hbm %s4, %s1805
          %s1807 = sshll.u32 %s1797, 4
          %s1808 = int_to_ptr.vmem [resolvable:$true] %s1807
          %1813 = dma.vmem_to_hbm [thread:$0]  %s1808, 4096, %s1806, %s1794, 128, 128, 8
        $region40: #{tpu_custom_call.1} parent=35 // pred_fallthru
          _
      $region36: #{tpu_custom_call.1} parent=5 // pred_fallthru
        _
      %p1814 = scmp.le.s32.totalorder 2, %s13
      // Predicated region
      $region41: #{tpu_custom_call.1} parent=5 // pred_check
        %p1815 = pneg %p1814
      $region42: #{tpu_custom_call.1} parent=5 // pred_check_branch
        %1817 = sbr.rel (%p1815) target = $region44
      $region43: #{tpu_custom_call.1} parent=5 // pred_region
        %s1818 = ssub.s32 %s13, 2
        // Predicated region
        $region45: #{tpu_custom_call.1} parent=43 // pred_check
          %p1819 = pneg %p140
        $region46: #{tpu_custom_call.1} parent=43 // pred_check_branch
          %1821 = sbr.rel (%p1819) target = $region48
        $region47: #{tpu_custom_call.1} parent=43 // pred_region
          %s1822 = sand.u32 %s125, 1
          %s1823 = scalar_lea.sflag [#allocation5], %s1822
          %s1824 = sand.u32 %s125, 1
          %s1825 = smul.addr %s1824, 256
          %s1826 = scalar_lea.vmem [#allocation4], %s1825
          %1827 = dma.done %s1823, 4096
        $region48: #{tpu_custom_call.1} parent=43 // pred_fallthru
          _
      $region44: #{tpu_custom_call.1} parent=5 // pred_fallthru
        _
    $region6: #{tpu_custom_call.1} parent=1 // loop_footer
      %s17 = sadd.s32 1, %s13
    $region7: #{tpu_custom_call.1} parent=1 // loop_footer_branch
      %12 = sbr.rel target = $region3
    $region8: #{tpu_custom_call.1} parent=1 // loop_exit
      _
    %1828 = vsyncpa [#allocation5], 1
    %s1829 = scalar_lea.sflag [#allocation5], 1
    %1830 = vsyncpa %s1829, 1

</llo_original>
